<compile_context>
chip_gen: v7x
topology: tpu7x:2x2x1
jax: 0.10.0
libtpu: 0.0.40
codegen_flags: <defaults>
</compile_context>

<pallas_src>
import math

import jax
import jax.numpy as jnp
from jax import lax
from jax.experimental import pallas as pl
from jax.experimental.pallas import tpu as pltpu

D_MODEL = 32
N_HEADS = 4
D_HEAD = D_MODEL // N_HEADS
D_FF = 64
EPS = 1e-6
SCALE = 1.0 / math.sqrt(D_HEAD)
NEG_INF = -1e9

# MXU operand dtype (accumulation stays f32).  bf16 is native on v5e/v6e/v7x MXUs;
# use jnp.float32 here if bit-close numerics are required.
MATMUL_DTYPE = jnp.bfloat16

# Column offsets inside the packed weight operand W_all = [wq|wk|wv|wo|w1|w2^T].
_W_QKV = (0, 3 * D_MODEL)                               # (32, 96)
_W_O = (3 * D_MODEL, 4 * D_MODEL)                       # (32, 32)
_W_1 = (4 * D_MODEL, 4 * D_MODEL + D_FF)                # (32, 64)
_W_2T = (4 * D_MODEL + D_FF, 4 * D_MODEL + 2 * D_FF)    # (32, 64)
W_COLS = 4 * D_MODEL + 2 * D_FF                         # 256 (lane-dense)


# ----------------------------- fused Pallas kernel -----------------------------

def _decoder_layer_kernel(x_ref, mem_ref, sbias_ref, tbias_ref, w_ref, vec_ref,
                          o_ref):
    Bb, T, D = x_ref.shape
    S = mem_ref.shape[1]
    R = Bb * T
    f32 = jnp.float32

    x = x_ref[...].reshape(R, D).astype(f32)          # leading-dim merge (free)
    mem = mem_ref[...].reshape(Bb * S, D).astype(f32)

    # ---- packed small parameters: one (4, 128) f32 tile ----
    ln_g = (vec_ref[0:1, 0:D], vec_ref[0:1, D:2 * D], vec_ref[0:1, 2 * D:3 * D])
    ln_b = (vec_ref[1:2, 0:D], vec_ref[1:2, D:2 * D], vec_ref[1:2, 2 * D:3 * D])
    bo = vec_ref[0:1, 3 * D:4 * D]
    b2 = vec_ref[1:2, 3 * D:4 * D]
    bqkv = vec_ref[2:3, 0:3 * D]
    b1 = vec_ref[3:4, 0:D_FF]

    # ---- packed weights: one (32, 256) lane-dense tile, resident across grid ----
    wqkv = w_ref[:, _W_QKV[0]:_W_QKV[1]]
    wo = w_ref[:, _W_O[0]:_W_O[1]]
    w1 = w_ref[:, _W_1[0]:_W_1[1]]
    w2t = w_ref[:, _W_2T[0]:_W_2T[1]]                 # feed-forward w2, pre-transposed

    def layer_norm(v, g, b):
        # Annotated-Transformer LayerNorm: unbiased std (n-1), eps added to std.
        mean = jnp.mean(v, axis=-1, keepdims=True)
        c = v - mean
        var = jnp.sum(c * c, axis=-1, keepdims=True) * (1.0 / (D - 1))
        return g * (c / (jnp.sqrt(var) + EPS)) + b

    def attention(q, k, v, bias):
        # q: (Tq, D), k/v: (Tk, D) f32;  bias: (Tm, Tk) additive (0 keep / -1e9 mask).
        Tq, Tk = q.shape[0], k.shape[0]
        qc = q.astype(MATMUL_DTYPE)
        kc = k.astype(MATMUL_DTYPE)
        vc = v.astype(MATMUL_DTYPE)
        # Per-head score dots (MXU, tiny) stacked on the sublane axis so the
        # mask-add + softmax run ONCE over (H*Tq, Tk) instead of per head.
        s_parts = []
        for h in range(N_HEADS):
            lo, hi = h * D_HEAD, (h + 1) * D_HEAD
            s_parts.append(lax.dot_general(
                qc[:, lo:hi], kc[:, lo:hi], (((1,), (1,)), ((), ())),
                preferred_element_type=f32))
        s = jnp.concatenate(s_parts, axis=0) * SCALE          # (H*Tq, Tk) f32
        if bias.shape[0] == 1:
            s = s + bias                                      # broadcast over rows
        else:
            s = s + jnp.concatenate([bias] * N_HEADS, axis=0)
        s = s - jnp.max(s, axis=-1, keepdims=True)
        p = jnp.exp(s)
        p = p / jnp.sum(p, axis=-1, keepdims=True)            # exact divide
        p = p.astype(MATMUL_DTYPE)
        o_parts = []
        for h in range(N_HEADS):
            lo, hi = h * D_HEAD, (h + 1) * D_HEAD
            o_parts.append(jnp.dot(p[h * Tq:(h + 1) * Tq, :], vc[:, lo:hi],
                                   preferred_element_type=f32))
        return jnp.concatenate(o_parts, axis=-1)              # (Tq, D) f32

    def stack_rows(parts):
        return parts[0] if len(parts) == 1 else jnp.concatenate(parts, axis=0)

    # ---------------- sublayer 0: masked self-attention ----------------
    nx = layer_norm(x, ln_g[0], ln_b[0])
    qkv = jnp.dot(nx.astype(MATMUL_DTYPE), wqkv,
                  preferred_element_type=f32) + bqkv           # (R, 3D)
    parts = []
    for b in range(Bb):                                        # static unroll
        r = b * T
        parts.append(attention(qkv[r:r + T, 0:D],
                               qkv[r:r + T, D:2 * D],
                               qkv[r:r + T, 2 * D:3 * D],
                               tbias_ref[b]))
    a = stack_rows(parts)
    a = jnp.dot(a.astype(MATMUL_DTYPE), wo, preferred_element_type=f32) + bo
    x = x + a

    # ------ sublayer 1: "source" attention (forward() reuses self_attn) ------
    nx = layer_norm(x, ln_g[1], ln_b[1])
    q_all = jnp.dot(nx.astype(MATMUL_DTYPE), w_ref[:, 0:D],
                    preferred_element_type=f32) + bqkv[:, 0:D]
    kv_all = jnp.dot(mem.astype(MATMUL_DTYPE), w_ref[:, D:3 * D],
                     preferred_element_type=f32) + bqkv[:, D:3 * D]
    parts = []
    for b in range(Bb):
        parts.append(attention(q_all[b * T:(b + 1) * T, :],
                               kv_all[b * S:(b + 1) * S, 0:D],
                               kv_all[b * S:(b + 1) * S, D:2 * D],
                               sbias_ref[b]))
    a = stack_rows(parts)
    a = jnp.dot(a.astype(MATMUL_DTYPE), wo, preferred_element_type=f32) + bo
    x = x + a

    # ---------------- sublayer 2: feed-forward ----------------
    nx = layer_norm(x, ln_g[2], ln_b[2])
    h1 = jnp.dot(nx.astype(MATMUL_DTYPE), w1, preferred_element_type=f32) + b1
    h1 = jnp.maximum(h1, 0.0)                                  # ReLU
    f = lax.dot_general(h1.astype(MATMUL_DTYPE), w2t, (((1,), (1,)), ((), ())),
                        preferred_element_type=f32) + b2
    x = x + f

    o_ref[...] = x.reshape(Bb, T, D).astype(o_ref.dtype)       # leading-dim split


# ----------------------------- wrapper -----------------------------

def _pick_block_b(batch: int) -> int:
    """Largest divisor of `batch` that keeps >=2 grid steps (v7x megacore),
    capped so the statically unrolled per-element loops stay small."""
    if batch <= 1:
        return 1
    best = 1
    for bb in range(1, min(batch // 2, 8) + 1):
        if batch % bb == 0:
            best = bb
    return best


def pack_params(params, matmul_dtype=MATMUL_DTYPE):
    """Pack all parameter tensors into two VMEM-resident operands.
    Called ONCE per weight load (hoisted out of the per-call path)."""
    attn, ffn = params["attn"], params["ffn"]
    w_all = jnp.concatenate(
        [attn["wq"], attn["wk"], attn["wv"], attn["wo"], ffn["w1"], ffn["w2"].T],
        axis=1).astype(matmul_dtype)                          # (32, 256)

    def row(*pieces):
        v = jnp.concatenate([p.reshape(-1).astype(jnp.float32) for p in pieces])
        return jnp.pad(v, (0, 128 - v.shape[0]))

    vec = jnp.stack([
        row(params["ln0_g"], params["ln1_g"], params["ln2_g"], attn["bo"]),
        row(params["ln0_b"], params["ln1_b"], params["ln2_b"], ffn["b2"]),
        row(attn["bq"], attn["bk"], attn["bv"]),
        row(ffn["b1"]),
    ])                                                         # (4, 128) f32
    return {"w": w_all, "vec": vec}


def decoder_layer(x, memory, src_mask, tgt_mask, packed):
    B, T, D = x.shape
    S = memory.shape[1]
    assert D == D_MODEL
    bb = _pick_block_b(B)

    # Masks -> additive biases (0 keep / -1e9 mask): one VPU add in-kernel instead
    # of a compare+select per head.  (Matches masked_fill except fully-masked rows.)
    src_bias = (1.0 - src_mask.astype(jnp.float32)) * NEG_INF
    tgt_bias = (1.0 - tgt_mask.astype(jnp.float32)) * NEG_INF
    Sm, Tm = src_bias.shape[1], tgt_bias.shape[1]

    def batch_spec(*tail):
        n = len(tail)
        return pl.BlockSpec((bb,) + tail, lambda i, _n=n: (i,) + (0,) * _n)

    def const_spec(shape):
        n = len(shape)
        return pl.BlockSpec(tuple(shape), lambda i, _n=n: (0,) * _n)

    return pl.pallas_call(
        _decoder_layer_kernel,
        out_shape=jax.ShapeDtypeStruct((B, T, D), x.dtype),
        grid=(B // bb,),
        in_specs=[
            batch_spec(T, D),                  # x
            batch_spec(S, D),                  # memory
            batch_spec(Sm, S),                 # src additive bias
            batch_spec(Tm, T),                 # tgt additive bias
            const_spec(packed["w"].shape),     # packed weights (resident, 1 DMA)
            const_spec(packed["vec"].shape),   # packed LN params + biases (1 DMA)
        ],
        out_specs=batch_spec(T, D),
        compiler_params=pltpu.CompilerParams(
            dimension_semantics=("parallel",)),   # shards batch blocks across TCs
    )(x, memory, src_bias, tgt_bias, packed["w"], packed["vec"])


# ----------------------------- parameter init -----------------------------

def init_params(key):
    ks = jax.random.split(key, 8)
    s = 0.02
    attn = {
        "wq": s * jax.random.normal(ks[0], (D_MODEL, D_MODEL), jnp.float32),
        "bq": jnp.zeros((D_MODEL,), jnp.float32),
        "wk": s * jax.random.normal(ks[1], (D_MODEL, D_MODEL), jnp.float32),
        "bk": jnp.zeros((D_MODEL,), jnp.float32),
        "wv": s * jax.random.normal(ks[2], (D_MODEL, D_MODEL), jnp.float32),
        "bv": jnp.zeros((D_MODEL,), jnp.float32),
        "wo": s * jax.random.normal(ks[3], (D_MODEL, D_MODEL), jnp.float32),
        "bo": jnp.zeros((D_MODEL,), jnp.float32),
    }
    ffn = {
        "w1": s * jax.random.normal(ks[4], (D_MODEL, D_FF), jnp.float32),
        "b1": jnp.zeros((D_FF,), jnp.float32),
        "w2": s * jax.random.normal(ks[5], (D_FF, D_MODEL), jnp.float32),
        "b2": jnp.zeros((D_MODEL,), jnp.float32),
    }
    p = {"attn": attn, "ffn": ffn}
    for i in range(3):
        p[f"ln{i}_g"] = jnp.ones((D_MODEL,), jnp.float32)
        p[f"ln{i}_b"] = jnp.zeros((D_MODEL,), jnp.float32)
    return p


# ----------------------------- main -----------------------------

if __name__ == "__main__":
    B, T, S = 2, 8, 8
    key = jax.random.PRNGKey(0)
    kx, km, kp = jax.random.split(key, 3)

    x = jax.random.normal(kx, (B, T, D_MODEL), jnp.float32)
    memory = jax.random.normal(km, (B, S, D_MODEL), jnp.float32)
    # tgt_mask: causal (subsequent) mask [B, T, T]; src_mask: all-ones [B, 1, S]
    tgt_mask = jnp.broadcast_to(jnp.tril(jnp.ones((T, T), jnp.float32))[None],
                                (B, T, T))
    src_mask = jnp.ones((B, 1, S), jnp.float32)

    params = init_params(kp)
    packed = pack_params(params)          # hoisted: done once per weight load

    fn = jax.jit(decoder_layer)
    out = jax.block_until_ready(fn(x, memory, src_mask, tgt_mask, packed))
    assert out.shape == (B, T, D_MODEL) and bool(jnp.all(jnp.isfinite(out)))
    print("KERNEL_OK")
</pallas_src>

<mosaic_0001>
module attributes {stable_mosaic.version = 11 : i64} {
  func.func @_decoder_layer_kernel(%arg0: i32, %arg1: memref<1x8x32xf32, #tpu.memory_space<vmem>>, %arg2: memref<1x8x32xf32, #tpu.memory_space<vmem>>, %arg3: memref<1x1x8xf32, #tpu.memory_space<vmem>>, %arg4: memref<1x8x8xf32, #tpu.memory_space<vmem>>, %arg5: memref<32x256xbf16, #tpu.memory_space<vmem>>, %arg6: memref<4x128xf32, #tpu.memory_space<vmem>>, %arg7: memref<1x8x32xf32, #tpu.memory_space<vmem>>) attributes {dimension_semantics = [#tpu.dimension_semantics<parallel>], iteration_bounds = array<i64: 2>, scalar_prefetch = 0 : i64, scratch_operands = 0 : i64, tpu.core_type = #tpu.core_type<tc>, window_params = [{transform_indices = @transform_0, window_bounds = array<i64: 1, 8, 32>}, {transform_indices = @transform_1, window_bounds = array<i64: 1, 8, 32>}, {transform_indices = @transform_2, window_bounds = array<i64: 1, 1, 8>}, {transform_indices = @transform_3, window_bounds = array<i64: 1, 8, 8>}, {pipeline_mode = #tpu.pipeline_mode<synchronous>, transform_indices = @transform_4, window_bounds = array<i64: 32, 256>}, {pipeline_mode = #tpu.pipeline_mode<synchronous>, transform_indices = @transform_5, window_bounds = array<i64: 4, 128>}, {transform_indices = @transform_6, window_bounds = array<i64: 1, 8, 32>}]} {
    %c0 = arith.constant 0 : index
    %c0_0 = arith.constant 0 : index
    %c0_1 = arith.constant 0 : index
    %0 = vector.load %arg1[%c0, %c0_0, %c0_1] : memref<1x8x32xf32, #tpu.memory_space<vmem>>, vector<1x8x32xf32>
    %1 = vector.shape_cast %0 : vector<1x8x32xf32> to vector<8x32xf32>
    %c0_2 = arith.constant 0 : index
    %c0_3 = arith.constant 0 : index
    %c0_4 = arith.constant 0 : index
    %2 = vector.load %arg2[%c0_2, %c0_3, %c0_4] : memref<1x8x32xf32, #tpu.memory_space<vmem>>, vector<1x8x32xf32>
    %3 = vector.shape_cast %2 : vector<1x8x32xf32> to vector<8x32xf32>
    %c0_5 = arith.constant 0 : index
    %c0_6 = arith.constant 0 : index
    %4 = vector.load %arg6[%c0_5, %c0_6] : memref<4x128xf32, #tpu.memory_space<vmem>>, vector<1x32xf32>
    %c0_7 = arith.constant 0 : index
    %c32 = arith.constant 32 : index
    %5 = vector.load %arg6[%c0_7, %c32] : memref<4x128xf32, #tpu.memory_space<vmem>>, vector<1x32xf32>
    %c0_8 = arith.constant 0 : index
    %c64 = arith.constant 64 : index
    %6 = vector.load %arg6[%c0_8, %c64] : memref<4x128xf32, #tpu.memory_space<vmem>>, vector<1x32xf32>
    %c1 = arith.constant 1 : index
    %c0_9 = arith.constant 0 : index
    %7 = vector.load %arg6[%c1, %c0_9] : memref<4x128xf32, #tpu.memory_space<vmem>>, vector<1x32xf32>
    %c1_10 = arith.constant 1 : index
    %c32_11 = arith.constant 32 : index
    %8 = vector.load %arg6[%c1_10, %c32_11] : memref<4x128xf32, #tpu.memory_space<vmem>>, vector<1x32xf32>
    %c1_12 = arith.constant 1 : index
    %c64_13 = arith.constant 64 : index
    %9 = vector.load %arg6[%c1_12, %c64_13] : memref<4x128xf32, #tpu.memory_space<vmem>>, vector<1x32xf32>
    %c0_14 = arith.constant 0 : index
    %c96 = arith.constant 96 : index
    %10 = vector.load %arg6[%c0_14, %c96] : memref<4x128xf32, #tpu.memory_space<vmem>>, vector<1x32xf32>
    %c1_15 = arith.constant 1 : index
    %c96_16 = arith.constant 96 : index
    %11 = vector.load %arg6[%c1_15, %c96_16] : memref<4x128xf32, #tpu.memory_space<vmem>>, vector<1x32xf32>
    %c2 = arith.constant 2 : index
    %c0_17 = arith.constant 0 : index
    %12 = vector.load %arg6[%c2, %c0_17] : memref<4x128xf32, #tpu.memory_space<vmem>>, vector<1x96xf32>
    %c3 = arith.constant 3 : index
    %c0_18 = arith.constant 0 : index
    %13 = vector.load %arg6[%c3, %c0_18] : memref<4x128xf32, #tpu.memory_space<vmem>>, vector<1x64xf32>
    %c0_19 = arith.constant 0 : index
    %c0_20 = arith.constant 0 : index
    %14 = vector.load %arg5[%c0_19, %c0_20] : memref<32x256xbf16, #tpu.memory_space<vmem>>, vector<32x96xbf16>
    %c0_21 = arith.constant 0 : index
    %c96_22 = arith.constant 96 : index
    %15 = vector.load %arg5[%c0_21, %c96_22] : memref<32x256xbf16, #tpu.memory_space<vmem>>, vector<32x32xbf16>
    %c0_23 = arith.constant 0 : index
    %c128 = arith.constant 128 : index
    %16 = vector.load %arg5[%c0_23, %c128] : memref<32x256xbf16, #tpu.memory_space<vmem>>, vector<32x64xbf16>
    %c0_24 = arith.constant 0 : index
    %c192 = arith.constant 192 : index
    %17 = vector.load %arg5[%c0_24, %c192] : memref<32x256xbf16, #tpu.memory_space<vmem>>, vector<32x64xbf16>
    %cst = arith.constant dense<0.000000e+00> : vector<8xf32>
    %18 = vector.multi_reduction <add>, %1, %cst [1] : vector<8x32xf32> to vector<8xf32>
    %19 = vector.shape_cast %18 : vector<8xf32> to vector<8x1xf32>
    %cst_25 = arith.constant 3.200000e+01 : f32
    %20 = vector.broadcast %cst_25 : f32 to vector<8x1xf32>
    %21 = arith.divf %19, %20 : vector<8x1xf32>
    %22 = vector.broadcast %21 : vector<8x1xf32> to vector<8x32xf32>
    %23 = arith.subf %1, %22 : vector<8x32xf32>
    %24 = arith.mulf %23, %23 : vector<8x32xf32>
    %cst_26 = arith.constant dense<0.000000e+00> : vector<8xf32>
    %25 = vector.multi_reduction <add>, %24, %cst_26 [1] : vector<8x32xf32> to vector<8xf32>
    %26 = vector.shape_cast %25 : vector<8xf32> to vector<8x1xf32>
    %cst_27 = arith.constant 0.0322580636 : f32
    %27 = vector.broadcast %cst_27 : f32 to vector<8x1xf32>
    %28 = arith.mulf %26, %27 : vector<8x1xf32>
    %29 = math.sqrt %28 : vector<8x1xf32>
    %cst_28 = arith.constant 9.99999997E-7 : f32
    %30 = vector.broadcast %cst_28 : f32 to vector<8x1xf32>
    %31 = arith.addf %29, %30 : vector<8x1xf32>
    %32 = vector.broadcast %31 : vector<8x1xf32> to vector<8x32xf32>
    %33 = arith.divf %23, %32 : vector<8x32xf32>
    %34 = vector.broadcast %4 : vector<1x32xf32> to vector<8x32xf32>
    %35 = arith.mulf %34, %33 : vector<8x32xf32>
    %36 = vector.broadcast %7 : vector<1x32xf32> to vector<8x32xf32>
    %37 = arith.addf %35, %36 : vector<8x32xf32>
    %38 = arith.truncf %37 : vector<8x32xf32> to vector<8x32xbf16>
    %cst_29 = arith.constant dense<0.000000e+00> : vector<8x96xf32>
    %39 = tpu.matmul %38, %14, %cst_29 {dimension_numbers = #tpu.dot_dimension_numbers<[1], [0], [0], [1], [0, 0, 1, 1], [], []>} : vector<8x32xbf16>, vector<32x96xbf16>, vector<8x96xf32> -> vector<8x96xf32>
    %40 = vector.broadcast %12 : vector<1x96xf32> to vector<8x96xf32>
    %41 = arith.addf %39, %40 : vector<8x96xf32>
    %42 = vector.extract_strided_slice %41 {offsets = [0, 0], sizes = [8, 32], strides = [1, 1]} : vector<8x96xf32> to vector<8x32xf32>
    %43 = vector.extract_strided_slice %41 {offsets = [0, 32], sizes = [8, 32], strides = [1, 1]} : vector<8x96xf32> to vector<8x32xf32>
    %44 = vector.extract_strided_slice %41 {offsets = [0, 64], sizes = [8, 32], strides = [1, 1]} : vector<8x96xf32> to vector<8x32xf32>
    %c0_30 = arith.constant 0 : index
    %c0_31 = arith.constant 0 : index
    %c0_32 = arith.constant 0 : index
    %45 = vector.load %arg4[%c0_30, %c0_31, %c0_32] : memref<1x8x8xf32, #tpu.memory_space<vmem>>, vector<1x8x8xf32>
    %46 = vector.shape_cast %45 : vector<1x8x8xf32> to vector<8x8xf32>
    %47 = arith.truncf %42 : vector<8x32xf32> to vector<8x32xbf16>
    %48 = arith.truncf %43 : vector<8x32xf32> to vector<8x32xbf16>
    %49 = arith.truncf %44 : vector<8x32xf32> to vector<8x32xbf16>
    %50 = vector.extract_strided_slice %47 {offsets = [0, 0], sizes = [8, 8], strides = [1, 1]} : vector<8x32xbf16> to vector<8x8xbf16>
    %51 = vector.extract_strided_slice %48 {offsets = [0, 0], sizes = [8, 8], strides = [1, 1]} : vector<8x32xbf16> to vector<8x8xbf16>
    %cst_33 = arith.constant dense<0.000000e+00> : vector<8x8xf32>
    %52 = tpu.matmul %50, %51, %cst_33 {dimension_numbers = #tpu.dot_dimension_numbers<[1], [1], [0], [0], [0, 0, 1, 0], [], []>} : vector<8x8xbf16>, vector<8x8xbf16>, vector<8x8xf32> -> vector<8x8xf32>
    %53 = vector.extract_strided_slice %47 {offsets = [0, 8], sizes = [8, 8], strides = [1, 1]} : vector<8x32xbf16> to vector<8x8xbf16>
    %54 = vector.extract_strided_slice %48 {offsets = [0, 8], sizes = [8, 8], strides = [1, 1]} : vector<8x32xbf16> to vector<8x8xbf16>
    %cst_34 = arith.constant dense<0.000000e+00> : vector<8x8xf32>
    %55 = tpu.matmul %53, %54, %cst_34 {dimension_numbers = #tpu.dot_dimension_numbers<[1], [1], [0], [0], [0, 0, 1, 0], [], []>} : vector<8x8xbf16>, vector<8x8xbf16>, vector<8x8xf32> -> vector<8x8xf32>
    %56 = vector.extract_strided_slice %47 {offsets = [0, 16], sizes = [8, 8], strides = [1, 1]} : vector<8x32xbf16> to vector<8x8xbf16>
    %57 = vector.extract_strided_slice %48 {offsets = [0, 16], sizes = [8, 8], strides = [1, 1]} : vector<8x32xbf16> to vector<8x8xbf16>
    %cst_35 = arith.constant dense<0.000000e+00> : vector<8x8xf32>
    %58 = tpu.matmul %56, %57, %cst_35 {dimension_numbers = #tpu.dot_dimension_numbers<[1], [1], [0], [0], [0, 0, 1, 0], [], []>} : vector<8x8xbf16>, vector<8x8xbf16>, vector<8x8xf32> -> vector<8x8xf32>
    %59 = vector.extract_strided_slice %47 {offsets = [0, 24], sizes = [8, 8], strides = [1, 1]} : vector<8x32xbf16> to vector<8x8xbf16>
    %60 = vector.extract_strided_slice %48 {offsets = [0, 24], sizes = [8, 8], strides = [1, 1]} : vector<8x32xbf16> to vector<8x8xbf16>
    %cst_36 = arith.constant dense<0.000000e+00> : vector<8x8xf32>
    %61 = tpu.matmul %59, %60, %cst_36 {dimension_numbers = #tpu.dot_dimension_numbers<[1], [1], [0], [0], [0, 0, 1, 0], [], []>} : vector<8x8xbf16>, vector<8x8xbf16>, vector<8x8xf32> -> vector<8x8xf32>
    %62 = tpu.concatenate %52, %55, %58, %61 in 0 : vector<8x8xf32>, vector<8x8xf32>, vector<8x8xf32>, vector<8x8xf32> -> vector<32x8xf32>
    %cst_37 = arith.constant 0.353553385 : f32
    %63 = vector.broadcast %cst_37 : f32 to vector<32x8xf32>
    %64 = arith.mulf %62, %63 : vector<32x8xf32>
    %65 = tpu.concatenate %46, %46, %46, %46 in 0 : vector<8x8xf32>, vector<8x8xf32>, vector<8x8xf32>, vector<8x8xf32> -> vector<32x8xf32>
    %66 = arith.addf %64, %65 : vector<32x8xf32>
    %cst_38 = arith.constant dense<0xFF800000> : vector<32xf32>
    %67 = vector.multi_reduction <maximumf>, %66, %cst_38 [1] : vector<32x8xf32> to vector<32xf32>
    %68 = vector.shape_cast %67 : vector<32xf32> to vector<32x1xf32>
    %69 = vector.broadcast %68 : vector<32x1xf32> to vector<32x8xf32>
    %70 = arith.subf %66, %69 : vector<32x8xf32>
    %71 = math.exp %70 : vector<32x8xf32>
    %cst_39 = arith.constant dense<0.000000e+00> : vector<32xf32>
    %72 = vector.multi_reduction <add>, %71, %cst_39 [1] : vector<32x8xf32> to vector<32xf32>
    %73 = vector.shape_cast %72 : vector<32xf32> to vector<32x1xf32>
    %74 = vector.broadcast %73 : vector<32x1xf32> to vector<32x8xf32>
    %75 = arith.divf %71, %74 : vector<32x8xf32>
    %76 = arith.truncf %75 : vector<32x8xf32> to vector<32x8xbf16>
    %77 = vector.extract_strided_slice %76 {offsets = [0, 0], sizes = [8, 8], strides = [1, 1]} : vector<32x8xbf16> to vector<8x8xbf16>
    %78 = vector.extract_strided_slice %49 {offsets = [0, 0], sizes = [8, 8], strides = [1, 1]} : vector<8x32xbf16> to vector<8x8xbf16>
    %cst_40 = arith.constant dense<0.000000e+00> : vector<8x8xf32>
    %79 = tpu.matmul %77, %78, %cst_40 {dimension_numbers = #tpu.dot_dimension_numbers<[1], [0], [0], [1], [0, 0, 1, 1], [], []>} : vector<8x8xbf16>, vector<8x8xbf16>, vector<8x8xf32> -> vector<8x8xf32>
    %80 = vector.extract_strided_slice %76 {offsets = [8, 0], sizes = [8, 8], strides = [1, 1]} : vector<32x8xbf16> to vector<8x8xbf16>
    %81 = vector.extract_strided_slice %49 {offsets = [0, 8], sizes = [8, 8], strides = [1, 1]} : vector<8x32xbf16> to vector<8x8xbf16>
    %cst_41 = arith.constant dense<0.000000e+00> : vector<8x8xf32>
    %82 = tpu.matmul %80, %81, %cst_41 {dimension_numbers = #tpu.dot_dimension_numbers<[1], [0], [0], [1], [0, 0, 1, 1], [], []>} : vector<8x8xbf16>, vector<8x8xbf16>, vector<8x8xf32> -> vector<8x8xf32>
    %83 = vector.extract_strided_slice %76 {offsets = [16, 0], sizes = [8, 8], strides = [1, 1]} : vector<32x8xbf16> to vector<8x8xbf16>
    %84 = vector.extract_strided_slice %49 {offsets = [0, 16], sizes = [8, 8], strides = [1, 1]} : vector<8x32xbf16> to vector<8x8xbf16>
    %cst_42 = arith.constant dense<0.000000e+00> : vector<8x8xf32>
    %85 = tpu.matmul %83, %84, %cst_42 {dimension_numbers = #tpu.dot_dimension_numbers<[1], [0], [0], [1], [0, 0, 1, 1], [], []>} : vector<8x8xbf16>, vector<8x8xbf16>, vector<8x8xf32> -> vector<8x8xf32>
    %86 = vector.extract_strided_slice %76 {offsets = [24, 0], sizes = [8, 8], strides = [1, 1]} : vector<32x8xbf16> to vector<8x8xbf16>
    %87 = vector.extract_strided_slice %49 {offsets = [0, 24], sizes = [8, 8], strides = [1, 1]} : vector<8x32xbf16> to vector<8x8xbf16>
    %cst_43 = arith.constant dense<0.000000e+00> : vector<8x8xf32>
    %88 = tpu.matmul %86, %87, %cst_43 {dimension_numbers = #tpu.dot_dimension_numbers<[1], [0], [0], [1], [0, 0, 1, 1], [], []>} : vector<8x8xbf16>, vector<8x8xbf16>, vector<8x8xf32> -> vector<8x8xf32>
    %89 = tpu.concatenate %79, %82, %85, %88 in 1 : vector<8x8xf32>, vector<8x8xf32>, vector<8x8xf32>, vector<8x8xf32> -> vector<8x32xf32>
    %90 = arith.truncf %89 : vector<8x32xf32> to vector<8x32xbf16>
    %cst_44 = arith.constant dense<0.000000e+00> : vector<8x32xf32>
    %91 = tpu.matmul %90, %15, %cst_44 {dimension_numbers = #tpu.dot_dimension_numbers<[1], [0], [0], [1], [0, 0, 1, 1], [], []>} : vector<8x32xbf16>, vector<32x32xbf16>, vector<8x32xf32> -> vector<8x32xf32>
    %92 = vector.broadcast %10 : vector<1x32xf32> to vector<8x32xf32>
    %93 = arith.addf %91, %92 : vector<8x32xf32>
    %94 = arith.addf %1, %93 : vector<8x32xf32>
    %cst_45 = arith.constant dense<0.000000e+00> : vector<8xf32>
    %95 = vector.multi_reduction <add>, %94, %cst_45 [1] : vector<8x32xf32> to vector<8xf32>
    %96 = vector.shape_cast %95 : vector<8xf32> to vector<8x1xf32>
    %cst_46 = arith.constant 3.200000e+01 : f32
    %97 = vector.broadcast %cst_46 : f32 to vector<8x1xf32>
    %98 = arith.divf %96, %97 : vector<8x1xf32>
    %99 = vector.broadcast %98 : vector<8x1xf32> to vector<8x32xf32>
    %100 = arith.subf %94, %99 : vector<8x32xf32>
    %101 = arith.mulf %100, %100 : vector<8x32xf32>
    %cst_47 = arith.constant dense<0.000000e+00> : vector<8xf32>
    %102 = vector.multi_reduction <add>, %101, %cst_47 [1] : vector<8x32xf32> to vector<8xf32>
    %103 = vector.shape_cast %102 : vector<8xf32> to vector<8x1xf32>
    %cst_48 = arith.constant 0.0322580636 : f32
    %104 = vector.broadcast %cst_48 : f32 to vector<8x1xf32>
    %105 = arith.mulf %103, %104 : vector<8x1xf32>
    %106 = math.sqrt %105 : vector<8x1xf32>
    %cst_49 = arith.constant 9.99999997E-7 : f32
    %107 = vector.broadcast %cst_49 : f32 to vector<8x1xf32>
    %108 = arith.addf %106, %107 : vector<8x1xf32>
    %109 = vector.broadcast %108 : vector<8x1xf32> to vector<8x32xf32>
    %110 = arith.divf %100, %109 : vector<8x32xf32>
    %111 = vector.broadcast %5 : vector<1x32xf32> to vector<8x32xf32>
    %112 = arith.mulf %111, %110 : vector<8x32xf32>
    %113 = vector.broadcast %8 : vector<1x32xf32> to vector<8x32xf32>
    %114 = arith.addf %112, %113 : vector<8x32xf32>
    %115 = arith.truncf %114 : vector<8x32xf32> to vector<8x32xbf16>
    %c0_50 = arith.constant 0 : index
    %c0_51 = arith.constant 0 : index
    %116 = vector.load %arg5[%c0_50, %c0_51] : memref<32x256xbf16, #tpu.memory_space<vmem>>, vector<32x32xbf16>
    %cst_52 = arith.constant dense<0.000000e+00> : vector<8x32xf32>
    %117 = tpu.matmul %115, %116, %cst_52 {dimension_numbers = #tpu.dot_dimension_numbers<[1], [0], [0], [1], [0, 0, 1, 1], [], []>} : vector<8x32xbf16>, vector<32x32xbf16>, vector<8x32xf32> -> vector<8x32xf32>
    %118 = vector.extract_strided_slice %12 {offsets = [0, 0], sizes = [1, 32], strides = [1, 1]} : vector<1x96xf32> to vector<1x32xf32>
    %119 = vector.broadcast %118 : vector<1x32xf32> to vector<8x32xf32>
    %120 = arith.addf %117, %119 : vector<8x32xf32>
    %121 = arith.truncf %3 : vector<8x32xf32> to vector<8x32xbf16>
    %c0_53 = arith.constant 0 : index
    %c32_54 = arith.constant 32 : index
    %122 = vector.load %arg5[%c0_53, %c32_54] : memref<32x256xbf16, #tpu.memory_space<vmem>>, vector<32x64xbf16>
    %cst_55 = arith.constant dense<0.000000e+00> : vector<8x64xf32>
    %123 = tpu.matmul %121, %122, %cst_55 {dimension_numbers = #tpu.dot_dimension_numbers<[1], [0], [0], [1], [0, 0, 1, 1], [], []>} : vector<8x32xbf16>, vector<32x64xbf16>, vector<8x64xf32> -> vector<8x64xf32>
    %124 = vector.extract_strided_slice %12 {offsets = [0, 32], sizes = [1, 64], strides = [1, 1]} : vector<1x96xf32> to vector<1x64xf32>
    %125 = vector.broadcast %124 : vector<1x64xf32> to vector<8x64xf32>
    %126 = arith.addf %123, %125 : vector<8x64xf32>
    %127 = vector.extract_strided_slice %126 {offsets = [0, 0], sizes = [8, 32], strides = [1, 1]} : vector<8x64xf32> to vector<8x32xf32>
    %128 = vector.extract_strided_slice %126 {offsets = [0, 32], sizes = [8, 32], strides = [1, 1]} : vector<8x64xf32> to vector<8x32xf32>
    %c0_56 = arith.constant 0 : index
    %c0_57 = arith.constant 0 : index
    %c0_58 = arith.constant 0 : index
    %129 = vector.load %arg3[%c0_56, %c0_57, %c0_58] : memref<1x1x8xf32, #tpu.memory_space<vmem>>, vector<1x1x8xf32>
    %130 = vector.shape_cast %129 : vector<1x1x8xf32> to vector<1x8xf32>
    %131 = arith.truncf %120 : vector<8x32xf32> to vector<8x32xbf16>
    %132 = arith.truncf %127 : vector<8x32xf32> to vector<8x32xbf16>
    %133 = arith.truncf %128 : vector<8x32xf32> to vector<8x32xbf16>
    %134 = vector.extract_strided_slice %131 {offsets = [0, 0], sizes = [8, 8], strides = [1, 1]} : vector<8x32xbf16> to vector<8x8xbf16>
    %135 = vector.extract_strided_slice %132 {offsets = [0, 0], sizes = [8, 8], strides = [1, 1]} : vector<8x32xbf16> to vector<8x8xbf16>
    %cst_59 = arith.constant dense<0.000000e+00> : vector<8x8xf32>
    %136 = tpu.matmul %134, %135, %cst_59 {dimension_numbers = #tpu.dot_dimension_numbers<[1], [1], [0], [0], [0, 0, 1, 0], [], []>} : vector<8x8xbf16>, vector<8x8xbf16>, vector<8x8xf32> -> vector<8x8xf32>
    %137 = vector.extract_strided_slice %131 {offsets = [0, 8], sizes = [8, 8], strides = [1, 1]} : vector<8x32xbf16> to vector<8x8xbf16>
    %138 = vector.extract_strided_slice %132 {offsets = [0, 8], sizes = [8, 8], strides = [1, 1]} : vector<8x32xbf16> to vector<8x8xbf16>
    %cst_60 = arith.constant dense<0.000000e+00> : vector<8x8xf32>
    %139 = tpu.matmul %137, %138, %cst_60 {dimension_numbers = #tpu.dot_dimension_numbers<[1], [1], [0], [0], [0, 0, 1, 0], [], []>} : vector<8x8xbf16>, vector<8x8xbf16>, vector<8x8xf32> -> vector<8x8xf32>
    %140 = vector.extract_strided_slice %131 {offsets = [0, 16], sizes = [8, 8], strides = [1, 1]} : vector<8x32xbf16> to vector<8x8xbf16>
    %141 = vector.extract_strided_slice %132 {offsets = [0, 16], sizes = [8, 8], strides = [1, 1]} : vector<8x32xbf16> to vector<8x8xbf16>
    %cst_61 = arith.constant dense<0.000000e+00> : vector<8x8xf32>
    %142 = tpu.matmul %140, %141, %cst_61 {dimension_numbers = #tpu.dot_dimension_numbers<[1], [1], [0], [0], [0, 0, 1, 0], [], []>} : vector<8x8xbf16>, vector<8x8xbf16>, vector<8x8xf32> -> vector<8x8xf32>
    %143 = vector.extract_strided_slice %131 {offsets = [0, 24], sizes = [8, 8], strides = [1, 1]} : vector<8x32xbf16> to vector<8x8xbf16>
    %144 = vector.extract_strided_slice %132 {offsets = [0, 24], sizes = [8, 8], strides = [1, 1]} : vector<8x32xbf16> to vector<8x8xbf16>
    %cst_62 = arith.constant dense<0.000000e+00> : vector<8x8xf32>
    %145 = tpu.matmul %143, %144, %cst_62 {dimension_numbers = #tpu.dot_dimension_numbers<[1], [1], [0], [0], [0, 0, 1, 0], [], []>} : vector<8x8xbf16>, vector<8x8xbf16>, vector<8x8xf32> -> vector<8x8xf32>
    %146 = tpu.concatenate %136, %139, %142, %145 in 0 : vector<8x8xf32>, vector<8x8xf32>, vector<8x8xf32>, vector<8x8xf32> -> vector<32x8xf32>
    %cst_63 = arith.constant 0.353553385 : f32
    %147 = vector.broadcast %cst_63 : f32 to vector<32x8xf32>
    %148 = arith.mulf %146, %147 : vector<32x8xf32>
    %149 = vector.broadcast %130 : vector<1x8xf32> to vector<32x8xf32>
    %150 = arith.addf %148, %149 : vector<32x8xf32>
    %cst_64 = arith.constant dense<0xFF800000> : vector<32xf32>
    %151 = vector.multi_reduction <maximumf>, %150, %cst_64 [1] : vector<32x8xf32> to vector<32xf32>
    %152 = vector.shape_cast %151 : vector<32xf32> to vector<32x1xf32>
    %153 = vector.broadcast %152 : vector<32x1xf32> to vector<32x8xf32>
    %154 = arith.subf %150, %153 : vector<32x8xf32>
    %155 = math.exp %154 : vector<32x8xf32>
    %cst_65 = arith.constant dense<0.000000e+00> : vector<32xf32>
    %156 = vector.multi_reduction <add>, %155, %cst_65 [1] : vector<32x8xf32> to vector<32xf32>
    %157 = vector.shape_cast %156 : vector<32xf32> to vector<32x1xf32>
    %158 = vector.broadcast %157 : vector<32x1xf32> to vector<32x8xf32>
    %159 = arith.divf %155, %158 : vector<32x8xf32>
    %160 = arith.truncf %159 : vector<32x8xf32> to vector<32x8xbf16>
    %161 = vector.extract_strided_slice %160 {offsets = [0, 0], sizes = [8, 8], strides = [1, 1]} : vector<32x8xbf16> to vector<8x8xbf16>
    %162 = vector.extract_strided_slice %133 {offsets = [0, 0], sizes = [8, 8], strides = [1, 1]} : vector<8x32xbf16> to vector<8x8xbf16>
    %cst_66 = arith.constant dense<0.000000e+00> : vector<8x8xf32>
    %163 = tpu.matmul %161, %162, %cst_66 {dimension_numbers = #tpu.dot_dimension_numbers<[1], [0], [0], [1], [0, 0, 1, 1], [], []>} : vector<8x8xbf16>, vector<8x8xbf16>, vector<8x8xf32> -> vector<8x8xf32>
    %164 = vector.extract_strided_slice %160 {offsets = [8, 0], sizes = [8, 8], strides = [1, 1]} : vector<32x8xbf16> to vector<8x8xbf16>
    %165 = vector.extract_strided_slice %133 {offsets = [0, 8], sizes = [8, 8], strides = [1, 1]} : vector<8x32xbf16> to vector<8x8xbf16>
    %cst_67 = arith.constant dense<0.000000e+00> : vector<8x8xf32>
    %166 = tpu.matmul %164, %165, %cst_67 {dimension_numbers = #tpu.dot_dimension_numbers<[1], [0], [0], [1], [0, 0, 1, 1], [], []>} : vector<8x8xbf16>, vector<8x8xbf16>, vector<8x8xf32> -> vector<8x8xf32>
    %167 = vector.extract_strided_slice %160 {offsets = [16, 0], sizes = [8, 8], strides = [1, 1]} : vector<32x8xbf16> to vector<8x8xbf16>
    %168 = vector.extract_strided_slice %133 {offsets = [0, 16], sizes = [8, 8], strides = [1, 1]} : vector<8x32xbf16> to vector<8x8xbf16>
    %cst_68 = arith.constant dense<0.000000e+00> : vector<8x8xf32>
    %169 = tpu.matmul %167, %168, %cst_68 {dimension_numbers = #tpu.dot_dimension_numbers<[1], [0], [0], [1], [0, 0, 1, 1], [], []>} : vector<8x8xbf16>, vector<8x8xbf16>, vector<8x8xf32> -> vector<8x8xf32>
    %170 = vector.extract_strided_slice %160 {offsets = [24, 0], sizes = [8, 8], strides = [1, 1]} : vector<32x8xbf16> to vector<8x8xbf16>
    %171 = vector.extract_strided_slice %133 {offsets = [0, 24], sizes = [8, 8], strides = [1, 1]} : vector<8x32xbf16> to vector<8x8xbf16>
    %cst_69 = arith.constant dense<0.000000e+00> : vector<8x8xf32>
    %172 = tpu.matmul %170, %171, %cst_69 {dimension_numbers = #tpu.dot_dimension_numbers<[1], [0], [0], [1], [0, 0, 1, 1], [], []>} : vector<8x8xbf16>, vector<8x8xbf16>, vector<8x8xf32> -> vector<8x8xf32>
    %173 = tpu.concatenate %163, %166, %169, %172 in 1 : vector<8x8xf32>, vector<8x8xf32>, vector<8x8xf32>, vector<8x8xf32> -> vector<8x32xf32>
    %174 = arith.truncf %173 : vector<8x32xf32> to vector<8x32xbf16>
    %cst_70 = arith.constant dense<0.000000e+00> : vector<8x32xf32>
    %175 = tpu.matmul %174, %15, %cst_70 {dimension_numbers = #tpu.dot_dimension_numbers<[1], [0], [0], [1], [0, 0, 1, 1], [], []>} : vector<8x32xbf16>, vector<32x32xbf16>, vector<8x32xf32> -> vector<8x32xf32>
    %176 = vector.broadcast %10 : vector<1x32xf32> to vector<8x32xf32>
    %177 = arith.addf %175, %176 : vector<8x32xf32>
    %178 = arith.addf %94, %177 : vector<8x32xf32>
    %cst_71 = arith.constant dense<0.000000e+00> : vector<8xf32>
    %179 = vector.multi_reduction <add>, %178, %cst_71 [1] : vector<8x32xf32> to vector<8xf32>
    %180 = vector.shape_cast %179 : vector<8xf32> to vector<8x1xf32>
    %cst_72 = arith.constant 3.200000e+01 : f32
    %181 = vector.broadcast %cst_72 : f32 to vector<8x1xf32>
    %182 = arith.divf %180, %181 : vector<8x1xf32>
    %183 = vector.broadcast %182 : vector<8x1xf32> to vector<8x32xf32>
    %184 = arith.subf %178, %183 : vector<8x32xf32>
    %185 = arith.mulf %184, %184 : vector<8x32xf32>
    %cst_73 = arith.constant dense<0.000000e+00> : vector<8xf32>
    %186 = vector.multi_reduction <add>, %185, %cst_73 [1] : vector<8x32xf32> to vector<8xf32>
    %187 = vector.shape_cast %186 : vector<8xf32> to vector<8x1xf32>
    %cst_74 = arith.constant 0.0322580636 : f32
    %188 = vector.broadcast %cst_74 : f32 to vector<8x1xf32>
    %189 = arith.mulf %187, %188 : vector<8x1xf32>
    %190 = math.sqrt %189 : vector<8x1xf32>
    %cst_75 = arith.constant 9.99999997E-7 : f32
    %191 = vector.broadcast %cst_75 : f32 to vector<8x1xf32>
    %192 = arith.addf %190, %191 : vector<8x1xf32>
    %193 = vector.broadcast %192 : vector<8x1xf32> to vector<8x32xf32>
    %194 = arith.divf %184, %193 : vector<8x32xf32>
    %195 = vector.broadcast %6 : vector<1x32xf32> to vector<8x32xf32>
    %196 = arith.mulf %195, %194 : vector<8x32xf32>
    %197 = vector.broadcast %9 : vector<1x32xf32> to vector<8x32xf32>
    %198 = arith.addf %196, %197 : vector<8x32xf32>
    %199 = arith.truncf %198 : vector<8x32xf32> to vector<8x32xbf16>
    %cst_76 = arith.constant dense<0.000000e+00> : vector<8x64xf32>
    %200 = tpu.matmul %199, %16, %cst_76 {dimension_numbers = #tpu.dot_dimension_numbers<[1], [0], [0], [1], [0, 0, 1, 1], [], []>} : vector<8x32xbf16>, vector<32x64xbf16>, vector<8x64xf32> -> vector<8x64xf32>
    %201 = vector.broadcast %13 : vector<1x64xf32> to vector<8x64xf32>
    %202 = arith.addf %200, %201 : vector<8x64xf32>
    %cst_77 = arith.constant 0.000000e+00 : f32
    %203 = vector.broadcast %cst_77 : f32 to vector<8x64xf32>
    %204 = arith.maximumf %202, %203 : vector<8x64xf32>
    %205 = arith.truncf %204 : vector<8x64xf32> to vector<8x64xbf16>
    %cst_78 = arith.constant dense<0.000000e+00> : vector<8x32xf32>
    %206 = tpu.matmul %205, %17, %cst_78 {dimension_numbers = #tpu.dot_dimension_numbers<[1], [1], [0], [0], [0, 0, 1, 0], [], []>} : vector<8x64xbf16>, vector<32x64xbf16>, vector<8x32xf32> -> vector<8x32xf32>
    %207 = vector.broadcast %11 : vector<1x32xf32> to vector<8x32xf32>
    %208 = arith.addf %206, %207 : vector<8x32xf32>
    %209 = arith.addf %178, %208 : vector<8x32xf32>
    %210 = vector.shape_cast %209 : vector<8x32xf32> to vector<1x8x32xf32>
    %c0_79 = arith.constant 0 : index
    %c0_80 = arith.constant 0 : index
    %c0_81 = arith.constant 0 : index
    %211 = vector.load %arg7[%c0_79, %c0_80, %c0_81] : memref<1x8x32xf32, #tpu.memory_space<vmem>>, vector<1x8x32xf32>
    tpu.vector_store %arg7[%c0_79, %c0_80, %c0_81], %210 {strides = array<i32>} : memref<1x8x32xf32, #tpu.memory_space<vmem>>, vector<1x8x32xf32>,
    return
  }
  func.func @transform_0(%arg0: i32) -> (i32, i32, i32) {
    %c0_i32 = arith.constant 0 : i32
    %c0_i32_0 = arith.constant 0 : i32
    %c0_i32_1 = arith.constant 0 : i32
    return %arg0, %c0_i32, %c0_i32_0 : i32, i32, i32
  }
  func.func @transform_1(%arg0: i32) -> (i32, i32, i32) {
    %c0_i32 = arith.constant 0 : i32
    %c0_i32_0 = arith.constant 0 : i32
    %c0_i32_1 = arith.constant 0 : i32
    return %arg0, %c0_i32, %c0_i32_0 : i32, i32, i32
  }
  func.func @transform_2(%arg0: i32) -> (i32, i32, i32) {
    %c0_i32 = arith.constant 0 : i32
    %c0_i32_0 = arith.constant 0 : i32
    %c0_i32_1 = arith.constant 0 : i32
    return %arg0, %c0_i32, %c0_i32_0 : i32, i32, i32
  }
  func.func @transform_3(%arg0: i32) -> (i32, i32, i32) {
    %c0_i32 = arith.constant 0 : i32
    %c0_i32_0 = arith.constant 0 : i32
    %c0_i32_1 = arith.constant 0 : i32
    return %arg0, %c0_i32, %c0_i32_0 : i32, i32, i32
  }
  func.func @transform_4(%arg0: i32) -> (i32, i32) {
    %c0_i32 = arith.constant 0 : i32
    %c0_i32_0 = arith.constant 0 : i32
    %c0_i32_1 = arith.constant 0 : i32
    return %c0_i32, %c0_i32_0 : i32, i32
  }
  func.func @transform_5(%arg0: i32) -> (i32, i32) {
    %c0_i32 = arith.constant 0 : i32
    %c0_i32_0 = arith.constant 0 : i32
    %c0_i32_1 = arith.constant 0 : i32
    return %c0_i32, %c0_i32_0 : i32, i32
  }
  func.func @transform_6(%arg0: i32) -> (i32, i32, i32) {
    %c0_i32 = arith.constant 0 : i32
    %c0_i32_0 = arith.constant 0 : i32
    %c0_i32_1 = arith.constant 0 : i32
    return %arg0, %c0_i32, %c0_i32_0 : i32, i32, i32
  }
}

</mosaic_0001>

<llo_original>
// kernel: decoder_layer.1
$region0: #{decoder_layer.1}
  #allocation0 [shape = 'u32[]', space=smem, size = 0x4, offset = 0x4, fixed_abs, tag = 'smem constant byte address 0x4 - core index']
  #allocation1 [shape = 'u32[144,128]{1,0:T(1,128)}', space=vmem, size = 0x12000, scoped, tag = 'internal scratch']
  %s0 = inlined_call_operand.vmem [shape: f32[2,8,32], index: 0, kind: input, shape index: {}]
  %s1 = inlined_call_operand.hbm [shape: f32[2,8,32], index: 1, kind: input, shape index: {}]
  %s2 = inlined_call_operand.vmem [shape: f32[2,1,8], index: 2, kind: input, shape index: {}]
  %s3 = inlined_call_operand.vmem [shape: f32[2,8,8], index: 3, kind: input, shape index: {}]
  %s4 = inlined_call_operand.vmem [shape: bf16[32,256], index: 4, kind: input, shape index: {}]
  %s5 = inlined_call_operand.vmem [shape: f32[4,128], index: 5, kind: input, shape index: {}]
  %s6 = inlined_call_operand.hbm [shape: f32[2,8,32], index: 6, kind: output, shape index: {}]
  %s7 = sld [smem:[#allocation0]]
  $region61: #{decoder_layer.1} parent=0
    _
  %s9 = ssub.s32 1, %s7
  %s10 = scalar_select 0, %s9, %s7
  $region1: #{decoder_layer.1} parent=0
    #allocation2 [shape = 'u8[8192]{0}', space=vmem, size = 0x2000, scoped, tag = 'input window, operand 1']
    #allocation3 [shape = 's32[2]{0}', space=sflag, size = 0x8, scoped, tag = 'scoped memory for decoder_layer.1']
    #allocation4 [shape = 's32[2]{0}', space=sflag, size = 0x8, scoped, tag = 'scoped memory for decoder_layer.1']
    #allocation5 [shape = 'u8[8192]{0}', space=vmem, size = 0x2000, scoped, tag = 'output window, operand 0']
    %11 = vsyncpa [#allocation3], 0
    %s12 = scalar_lea.sflag [#allocation3], 1
    %13 = vsyncpa %s12, 0
    %14 = vsyncpa [#allocation4], 0
    %s15 = scalar_lea.sflag [#allocation4], 1
    %16 = vsyncpa %s15, 0
    loop: start=0, step=1, limit=4
    $region2: #{decoder_layer.1} parent=1 // loop_pre_header
      _
    $region3: #{decoder_layer.1} parent=1 // loop_header
      %s18 = sphi 0, %s22
      %p19 = scmp.ge.s32.totalorder %s18, 4
      %s28 = sphi 0, %s30
      %s31 = sphi 0, %s28
      %s32 = sphi 0, %s31
      %s48 = sphi 0, %s32
      %s54 = sphi 0, %s56
      %s57 = sphi 0, %s54
      %s58 = sphi 0, %s57
      %s74 = sphi 0, %s58
      %s80 = sphi 0, %s82
      %s83 = sphi 0, %s80
      %s84 = sphi 0, %s83
      %s100 = sphi 0, %s84
      %s106 = sphi 0, %s108
      %s109 = sphi 0, %s106
      %s110 = sphi 0, %s109
      %s126 = sphi 0, %s110
      %s130 = sphi 0, %s130
      %s132 = sphi 0, %s130
      %s133 = sphi 0, %s132
      %s147 = sphi 0, %s133
      %s151 = sphi 0, %s151
      %s153 = sphi 0, %s151
      %s154 = sphi 0, %s153
      %s168 = sphi 0, %s154
      %s174 = sphi 0, %s176
      %s177 = sphi 0, %s174
      %s178 = sphi 0, %s177
      %s194 = sphi 0, %s178
    $region4: #{decoder_layer.1} parent=1 // loop_header_branch
      %21 = sbr.rel (%p19) target = $region8
    $region5: #{decoder_layer.1} parent=1 // loop_body
      %s23 = ssub.s32 %s18, 1
      %s24 = ssub.s32 %s18, 2
      %s25 = sadd.s32 %s18, 1
      %s26 = ssub.s32 %s18, %s25
      %p27 = scmp.eq.s32.totalorder %s26, 0
      %s29 = sadd.s32 %s28, 1
      %s30 = scalar_select %p27, %s28, %s29
      %p33 = pneg %p27
      %p34 = scmp.eq.s32.totalorder %s18, 1
      %p35 = por %p33, %p34
      %p36 = scmp.ne.s32.totalorder %s28, %s31
      %p37 = scmp.eq.s32.totalorder %s18, 0
      %p38 = por %p36, %p37
      %p39 = scmp.ne.s32.totalorder %s28, %s31
      %p40 = scmp.eq.s32.totalorder %s23, 1
      %p41 = por %p39, %p40
      %p42 = scmp.ne.s32.totalorder %s31, %s32
      %p43 = scmp.eq.s32.totalorder %s23, 0
      %p44 = por %p42, %p43
      %p45 = scmp.ne.s32.totalorder %s31, %s32
      %p46 = scmp.eq.s32.totalorder %s24, 1
      %p47 = por %p45, %p46
      %p49 = scmp.ne.s32.totalorder %s32, %s48
      %p50 = scmp.eq.s32.totalorder %s24, 0
      %p51 = por %p49, %p50
      %s52 = ssub.s32 %s18, %s25
      %p53 = scmp.eq.s32.totalorder %s52, 0
      %s55 = sadd.s32 %s54, 1
      %s56 = scalar_select %p53, %s54, %s55
      %p59 = pneg %p53
      %p60 = scmp.eq.s32.totalorder %s18, 1
      %p61 = por %p59, %p60
      %p62 = scmp.ne.s32.totalorder %s54, %s57
      %p63 = scmp.eq.s32.totalorder %s18, 0
      %p64 = por %p62, %p63
      %p65 = scmp.ne.s32.totalorder %s54, %s57
      %p66 = scmp.eq.s32.totalorder %s23, 1
      %p67 = por %p65, %p66
      %p68 = scmp.ne.s32.totalorder %s57, %s58
      %p69 = scmp.eq.s32.totalorder %s23, 0
      %p70 = por %p68, %p69
      %p71 = scmp.ne.s32.totalorder %s57, %s58
      %p72 = scmp.eq.s32.totalorder %s24, 1
      %p73 = por %p71, %p72
      %p75 = scmp.ne.s32.totalorder %s58, %s74
      %p76 = scmp.eq.s32.totalorder %s24, 0
      %p77 = por %p75, %p76
      %s78 = ssub.s32 %s18, %s25
      %p79 = scmp.eq.s32.totalorder %s78, 0
      %s81 = sadd.s32 %s80, 1
      %s82 = scalar_select %p79, %s80, %s81
      %p85 = pneg %p79
      %p86 = scmp.eq.s32.totalorder %s18, 1
      %p87 = por %p85, %p86
      %p88 = scmp.ne.s32.totalorder %s80, %s83
      %p89 = scmp.eq.s32.totalorder %s18, 0
      %p90 = por %p88, %p89
      %p91 = scmp.ne.s32.totalorder %s80, %s83
      %p92 = scmp.eq.s32.totalorder %s23, 1
      %p93 = por %p91, %p92
      %p94 = scmp.ne.s32.totalorder %s83, %s84
      %p95 = scmp.eq.s32.totalorder %s23, 0
      %p96 = por %p94, %p95
      %p97 = scmp.ne.s32.totalorder %s83, %s84
      %p98 = scmp.eq.s32.totalorder %s24, 1
      %p99 = por %p97, %p98
      %p101 = scmp.ne.s32.totalorder %s84, %s100
      %p102 = scmp.eq.s32.totalorder %s24, 0
      %p103 = por %p101, %p102
      %s104 = ssub.s32 %s18, %s25
      %p105 = scmp.eq.s32.totalorder %s104, 0
      %s107 = sadd.s32 %s106, 1
      %s108 = scalar_select %p105, %s106, %s107
      %p111 = pneg %p105
      %p112 = scmp.eq.s32.totalorder %s18, 1
      %p113 = por %p111, %p112
      %p114 = scmp.ne.s32.totalorder %s106, %s109
      %p115 = scmp.eq.s32.totalorder %s18, 0
      %p116 = por %p114, %p115
      %p117 = scmp.ne.s32.totalorder %s106, %s109
      %p118 = scmp.eq.s32.totalorder %s23, 1
      %p119 = por %p117, %p118
      %p120 = scmp.ne.s32.totalorder %s109, %s110
      %p121 = scmp.eq.s32.totalorder %s23, 0
      %p122 = por %p120, %p121
      %p123 = scmp.ne.s32.totalorder %s109, %s110
      %p124 = scmp.eq.s32.totalorder %s24, 1
      %p125 = por %p123, %p124
      %p127 = scmp.ne.s32.totalorder %s110, %s126
      %p128 = scmp.eq.s32.totalorder %s24, 0
      %p129 = por %p127, %p128
      %s131 = sadd.s32 %s130, 1
      %p134 = scmp.eq.s32.totalorder %s18, 1
      %p135 = scmp.ne.s32.totalorder %s130, %s132
      %p136 = scmp.eq.s32.totalorder %s18, 0
      %p137 = por %p135, %p136
      %p138 = scmp.ne.s32.totalorder %s130, %s132
      %p139 = scmp.eq.s32.totalorder %s23, 1
      %p140 = por %p138, %p139
      %p141 = scmp.ne.s32.totalorder %s132, %s133
      %p142 = scmp.eq.s32.totalorder %s23, 0
      %p143 = por %p141, %p142
      %p144 = scmp.ne.s32.totalorder %s132, %s133
      %p145 = scmp.eq.s32.totalorder %s24, 1
      %p146 = por %p144, %p145
      %p148 = scmp.ne.s32.totalorder %s133, %s147
      %p149 = scmp.eq.s32.totalorder %s24, 0
      %p150 = por %p148, %p149
      %s152 = sadd.s32 %s151, 1
      %p155 = scmp.eq.s32.totalorder %s18, 1
      %p156 = scmp.ne.s32.totalorder %s151, %s153
      %p157 = scmp.eq.s32.totalorder %s18, 0
      %p158 = por %p156, %p157
      %p159 = scmp.ne.s32.totalorder %s151, %s153
      %p160 = scmp.eq.s32.totalorder %s23, 1
      %p161 = por %p159, %p160
      %p162 = scmp.ne.s32.totalorder %s153, %s154
      %p163 = scmp.eq.s32.totalorder %s23, 0
      %p164 = por %p162, %p163
      %p165 = scmp.ne.s32.totalorder %s153, %s154
      %p166 = scmp.eq.s32.totalorder %s24, 1
      %p167 = por %p165, %p166
      %p169 = scmp.ne.s32.totalorder %s154, %s168
      %p170 = scmp.eq.s32.totalorder %s24, 0
      %p171 = por %p169, %p170
      %s172 = ssub.s32 %s18, %s25
      %p173 = scmp.eq.s32.totalorder %s172, 0
      %s175 = sadd.s32 %s174, 1
      %s176 = scalar_select %p173, %s174, %s175
      %p179 = pneg %p173
      %p180 = scmp.eq.s32.totalorder %s18, 1
      %p181 = por %p179, %p180
      %p182 = scmp.ne.s32.totalorder %s174, %s177
      %p183 = scmp.eq.s32.totalorder %s18, 0
      %p184 = por %p182, %p183
      %p185 = scmp.ne.s32.totalorder %s174, %s177
      %p186 = scmp.eq.s32.totalorder %s23, 1
      %p187 = por %p185, %p186
      %p188 = scmp.ne.s32.totalorder %s177, %s178
      %p189 = scmp.eq.s32.totalorder %s23, 0
      %p190 = por %p188, %p189
      %p191 = scmp.ne.s32.totalorder %s177, %s178
      %p192 = scmp.eq.s32.totalorder %s24, 1
      %p193 = por %p191, %p192
      %p195 = scmp.ne.s32.totalorder %s178, %s194
      %p196 = scmp.eq.s32.totalorder %s24, 0
      %p197 = por %p195, %p196
      %p198 = scmp.le.s32.totalorder 1, %s18
      %p199 = scmp.lt.s32.totalorder %s18, 3
      %p200 = pnand %p198, %p199
      %p201 = pneg %p200
      // Predicated region
      $region9: #{decoder_layer.1} parent=5 // pred_check
        _
      $region10: #{decoder_layer.1} parent=5 // pred_check_branch
        %203 = sbr.rel (%p200) target = $region12
      $region11: #{decoder_layer.1} parent=5 // pred_region
        %s204 = ssub.s32 %s18, 1
        // Predicated region
        $region13: #{decoder_layer.1} parent=11 // pred_check
          %p205 = pneg %p143
        $region14: #{decoder_layer.1} parent=11 // pred_check_branch
          %207 = sbr.rel (%p205) target = $region16
        $region15: #{decoder_layer.1} parent=11 // pred_region
          _
        $region16: #{decoder_layer.1} parent=11 // pred_fallthru
          _
        // Predicated region
        $region17: #{decoder_layer.1} parent=11 // pred_check
          %p208 = pneg %p164
        $region18: #{decoder_layer.1} parent=11 // pred_check_branch
          %210 = sbr.rel (%p208) target = $region20
        $region19: #{decoder_layer.1} parent=11 // pred_region
          _
        $region20: #{decoder_layer.1} parent=11 // pred_fallthru
          _
      $region12: #{decoder_layer.1} parent=5 // pred_fallthru
        _
      %p211 = scmp.lt.s32.totalorder %s18, 2
      // Predicated region
      $region21: #{decoder_layer.1} parent=5 // pred_check
        %p212 = pneg %p211
      $region22: #{decoder_layer.1} parent=5 // pred_check_branch
        %214 = sbr.rel (%p212) target = $region24
      $region23: #{decoder_layer.1} parent=5 // pred_region
        // Predicated region
        $region25: #{decoder_layer.1} parent=23 // pred_check
          %p215 = pneg %p38
        $region26: #{decoder_layer.1} parent=23 // pred_check_branch
          %217 = sbr.rel (%p215) target = $region28
        $region27: #{decoder_layer.1} parent=23 // pred_region
          %p218 = scmp.lt.s32.totalorder %s18, 1
          %s219 = scalar_select %p218, %s18, 1
          %s220 = smul.addr %s219, 8
          %s221 = scalar_lea.vmem %s0, %s220
        $region28: #{decoder_layer.1} parent=23 // pred_fallthru
          _
        // Predicated region
        $region29: #{decoder_layer.1} parent=23 // pred_check
          %p222 = pneg %p64
        $region30: #{decoder_layer.1} parent=23 // pred_check_branch
          %224 = sbr.rel (%p222) target = $region32
        $region31: #{decoder_layer.1} parent=23 // pred_region
          %s225 = sand.u32 %s54, 1
          %s226 = scalar_lea.sflag [#allocation3], %s225
          %s227 = sand.u32 %s54, 1
          %s228 = smul.addr %s227, 8
          %s229 = scalar_lea.vmem [#allocation2], %s228
          %s231 = ssub.s32 128, 128
          %232 = vsyncadd %s226, %s231
          %s233 = smul.addr %s18, 128
          %s234 = scalar_lea.hbm %s1, %s233
          %s236 = sshll.u32 %s229, 4
          %s237 = int_to_ptr.vmem [resolvable:$true] %s236
          %239 = dma.hbm_to_vmem [thread:$0]  %s234, 128, %s237, %s226
        $region32: #{decoder_layer.1} parent=23 // pred_fallthru
          _
        // Predicated region
        $region33: #{decoder_layer.1} parent=23 // pred_check
          %p240 = pneg %p90
        $region34: #{decoder_layer.1} parent=23 // pred_check_branch
          %242 = sbr.rel (%p240) target = $region36
        $region35: #{decoder_layer.1} parent=23 // pred_region
          %p243 = scmp.lt.s32.totalorder %s18, 1
          %s244 = scalar_select %p243, %s18, 1
          %s245 = scalar_lea.vmem %s2, %s244
        $region36: #{decoder_layer.1} parent=23 // pred_fallthru
          _
        // Predicated region
        $region37: #{decoder_layer.1} parent=23 // pred_check
          %p246 = pneg %p116
        $region38: #{decoder_layer.1} parent=23 // pred_check_branch
          %248 = sbr.rel (%p246) target = $region40
        $region39: #{decoder_layer.1} parent=23 // pred_region
          %p249 = scmp.lt.s32.totalorder %s18, 1
          %s250 = scalar_select %p249, %s18, 1
          %s251 = smul.addr %s250, 8
          %s252 = scalar_lea.vmem %s3, %s251
        $region40: #{decoder_layer.1} parent=23 // pred_fallthru
          _
      $region24: #{decoder_layer.1} parent=5 // pred_fallthru
        _
      %p253 = scmp.le.s32.totalorder 1, %s18
      %p254 = scmp.lt.s32.totalorder %s18, 3
      %p255 = pnand %p253, %p254
      %p256 = pneg %p255
      // Predicated region
      $region41: #{decoder_layer.1} parent=5 // pred_check
        _
      $region42: #{decoder_layer.1} parent=5 // pred_check_branch
        %258 = sbr.rel (%p255) target = $region44
      $region43: #{decoder_layer.1} parent=5 // pred_region
        %s259 = ssub.s32 %s18, 1
        %s260 = sand.u32 %s57, 1
        %s261 = scalar_lea.sflag [#allocation3], %s260
        %s262 = sand.u32 %s57, 1
        %s263 = smul.addr %s262, 8
        %s264 = scalar_lea.vmem [#allocation2], %s263
        // Predicated region
        $region45: #{decoder_layer.1} parent=43 // pred_check
          %p265 = pneg %p70
        $region46: #{decoder_layer.1} parent=43 // pred_check_branch
          %267 = sbr.rel (%p265) target = $region48
        $region47: #{decoder_layer.1} parent=43 // pred_region
          %268 = dma.done %s261, 128
        $region48: #{decoder_layer.1} parent=43 // pred_fallthru
          _
        %p269 = scmp.lt.s32.totalorder %s23, 1
        %s270 = scalar_select %p269, %s23, 1
        %s271 = smul.addr %s270, 8
        %s272 = scalar_lea.vmem %s0, %s271
        %p273 = pneg %p44
        %p274 = pneg %p41
        %s275 = sand.u32 %s57, 1
        %s276 = scalar_lea.sflag [#allocation3], %s275
        %s277 = sand.u32 %s57, 1
        %s278 = smul.addr %s277, 8
        %s279 = scalar_lea.vmem [#allocation2], %s278
        %p280 = pneg %p70
        %p281 = pneg %p67
        %p282 = scmp.lt.s32.totalorder %s23, 1
        %s283 = scalar_select %p282, %s23, 1
        %s284 = scalar_lea.vmem %s2, %s283
        %p285 = pneg %p96
        %p286 = pneg %p93
        %p287 = scmp.lt.s32.totalorder %s23, 1
        %s288 = scalar_select %p287, %s23, 1
        %s289 = smul.addr %s288, 8
        %s290 = scalar_lea.vmem %s3, %s289
        %p291 = pneg %p122
        %p292 = pneg %p119
        %p293 = pneg %p143
        %p294 = pneg %p140
        %p295 = pneg %p164
        %p296 = pneg %p161
        %p297 = pneg %p190
        %p298 = pneg %p187
        %s299 = sand.u32 %s177, 1
        %s300 = scalar_lea.sflag [#allocation4], %s299
        %s301 = sand.u32 %s177, 1
        %s302 = smul.addr %s301, 8
        %s303 = scalar_lea.vmem [#allocation5], %s302
        %p304 = scmp.lt.s32.totalorder %s23, 1
        %s305 = scalar_select %p304, %s23, 1
        %s306 = smul.addr %s305, 8
        %s307 = scalar_lea.vmem %s0, %s306
        %p308 = scmp.lt.s32.totalorder %s23, 1
        %s309 = scalar_select %p308, %s23, 1
        %s310 = scalar_lea.vmem %s2, %s309
        %p311 = scmp.lt.s32.totalorder %s23, 1
        %s312 = scalar_select %p311, %s23, 1
        %s313 = smul.addr %s312, 8
        %s314 = scalar_lea.vmem %s3, %s313
        %v316 = vld [vmem:[%s307] sm:$0xff]
        %v317 = vld [vmem:[%s264] sm:$0xff]
        %v318 = vld [vmem:[%s5] sm:$0x1]
        %v319 = vld [vmem:[%s5 + $0x1] sm:$0x1]
        %v320 = vld [vmem:[%s5 + $0x2] sm:$0x1]
        %v321 = vld [vmem:[%s5 + $0x3] sm:$0x1]
        %v322 = vld [vmem:[%s4] sm:$0xf]
        %v323 = vld [vmem:[%s4 + $0x8] sm:$0xf]
        %v324 = vld [vmem:[%s4 + $0x10] sm:$0xf]
        %v325 = vld [vmem:[%s4 + $0x18] sm:$0xf]
        %v326 = vld [vmem:[%s4 + $0x4] sm:$0xf]
        %v327 = vld [vmem:[%s4 + $0xc] sm:$0xf]
        %v328 = vld [vmem:[%s4 + $0x14] sm:$0xf]
        %v329 = vld [vmem:[%s4 + $0x1c] sm:$0xf]
        %vm330 = vcmask 261120
        %v331 = vsel %vm330, %v316, 0.0
        %332 = vadd.xlane.f32.xlu0 %v331
        %v333 = vpop.xlane.xlu0 %332
        %v334 = vrcp.pop 32.0
        %v335 = vmul.f32 %v333, %v334
        %v336 = vsub.f32 %v316, %v335
        %v337 = vmul.f32 %v336, %v336
        %v338 = vsel %vm330, %v337, 0.0
        %339 = vadd.xlane.f32.xlu0 %v338
        %v340 = vpop.xlane.xlu0 %339
        %v341 = vmul.f32 %v340, 0.032258064
        %v342 = vrsqrt.pop %v341
        %v343 = vmul.f32 %v341, %v342
        %vm344 = vcmp.eq.f32.partialorder %v341, inf
        %v345 = vsel %vm344, %v341, %v343
        %vm346 = vcmp.eq.f32.partialorder %v341, 0.0
        %v347 = vand.u32 %v341, 2147483648
        %v348 = vsel %vm346, %v347, %v345
        %v349 = vadd.f32 %v348, 1e-06
        %v350 = vrcp.pop %v349
        %v351 = vmul.f32 %v336, %v350
        %v352 = vlaneseq
        %v353 = vshrl.u32 %v352, 7
        %v354 = vsub.s32 0, %v353
        %v355 = vrot.slane %v318, %v354
        %v356 = vmul.f32 %v355, %v351
        %v357 = vlaneseq
        %v358 = vshrl.u32 %v357, 7
        %v359 = vsub.s32 0, %v358
        %v360 = vrot.slane %v319, %v359
        %v361 = vadd.f32 %v356, %v360
        %v362 = vpack.c.bf16 %v361, %v361
        %v363 = vlaneseq
        %v364 = vshrl.u32 %v363, 7
        %v365 = vsub.s32 0, %v364
        %v366 = vrot.slane %v320, %v365
        %v371 = vunpack.c.l.b16 %v322
        %v372 = vunpack.c.l.b16 %v323
        %v373 = vunpack.c.l.b16 %v324
        %v374 = vunpack.c.l.b16 %v325
        %v375 = vpack.c.b16 %v372, %v371
        %v376 = vpack.c.b16 %v374, %v373
        %v380 = vsel %vm330, %v362, 0
        %382 = vmatprep.subr.bf16.mxu0 0
        %383 = vmatpush1.bf16.msra.mxu0 %v375
        %384 = vmatprep.subr.bf16.mxu0 0
        %385 = vmatpush1.bf16.msra.mxu0 %v376
        %386 = vmatprep.subr.bf16.mxu0 0
        %387 = vmatpush1.bf16.msra.mxu0 0
        %388 = vmatprep.subr.bf16.mxu0 0
        %389 = vmatpush1.bf16.msra.mxu0 0
        %390 = vmatprep.subr.bf16.mxu0 0
        %391 = vmatpush1.bf16.msra.mxu0 0
        %392 = vmatprep.subr.bf16.mxu0 0
        %393 = vmatpush1.bf16.msra.mxu0 0
        %394 = vmatprep.subr.bf16.mxu0 0
        %395 = vmatpush1.bf16.msra.mxu0 0
        %396 = vmatprep.subr.bf16.mxu0 0
        %397 = vmatpush1.bf16.msra.mxu0 0
        %398 = vmatprep.subr.bf16.mxu0 0
        %399 = vmatpush1.bf16.msra.mxu0 0
        %400 = vmatprep.subr.bf16.mxu0 0
        %401 = vmatpush1.bf16.msra.mxu0 0
        %402 = vmatprep.subr.bf16.mxu0 0
        %403 = vmatpush1.bf16.msra.mxu0 0
        %404 = vmatprep.subr.bf16.mxu0 0
        %405 = vmatpush1.bf16.msra.mxu0 0
        %406 = vmatprep.subr.bf16.mxu0 0
        %407 = vmatpush1.bf16.msra.mxu0 0
        %408 = vmatprep.subr.bf16.mxu0 0
        %409 = vmatpush1.bf16.msra.mxu0 0
        %410 = vmatprep.subr.bf16.mxu0 0
        %411 = vmatpush1.bf16.msra.mxu0 0
        %412 = vmatprep.subr.bf16.mxu0 0
        %413 = vmatpush1.bf16.msra.mxu0 0
        %414 = vmatprep.mubr.bf16.mxu0 0
        %415 = vmatmul.mubr.bf16.gmra.mrb[0].mxu0 %v380
        %v416 = vpop.f32.mrb[0].mxu0
        %v417 = vadd.f32 %v366, %v416
        %v418 = vpop.f32.mrb[0].mxu0
        %v419 = vpop.f32.mrb[0].mxu0
        %v420 = vpop.f32.mrb[0].mxu0
        %421 = vdwg.mxu0
        %v422 = vld [vmem:[%s314] sm:$0xff]
        %v423 = vpack.c.bf16 %v417, %v417
        %425 = vrot.lane.b32.xlu0 %v423, 96
        %v426 = vpop.permute.xlu0 %425
        %vm427 = vcmask 64512
        %v429 = vsel %vm427, %v423, 0
        %v432 = vsel %vm427, %v426, 0
        %434 = vmatprep.subr.bf16.mxu0 0
        %435 = vmatpush1.bf16.xpose.msra.mxu0 %v432
        %436 = vmatprep.subr.bf16.mxu0 0
        %437 = vmatpush1.bf16.xpose.msra.mxu0 0
        %438 = vmatprep.subr.bf16.mxu0 0
        %439 = vmatpush1.bf16.xpose.msra.mxu0 0
        %440 = vmatprep.subr.bf16.mxu0 0
        %441 = vmatpush1.bf16.xpose.msra.mxu0 0
        %442 = vmatprep.subr.bf16.mxu0 0
        %443 = vmatpush1.bf16.xpose.msra.mxu0 0
        %444 = vmatprep.subr.bf16.mxu0 0
        %445 = vmatpush1.bf16.xpose.msra.mxu0 0
        %446 = vmatprep.subr.bf16.mxu0 0
        %447 = vmatpush1.bf16.xpose.msra.mxu0 0
        %448 = vmatprep.subr.bf16.mxu0 0
        %449 = vmatpush1.bf16.xpose.msra.mxu0 0
        %450 = vmatprep.subr.bf16.mxu0 0
        %451 = vmatpush1.bf16.xpose.msra.mxu0 0
        %452 = vmatprep.subr.bf16.mxu0 0
        %453 = vmatpush1.bf16.xpose.msra.mxu0 0
        %454 = vmatprep.subr.bf16.mxu0 0
        %455 = vmatpush1.bf16.xpose.msra.mxu0 0
        %456 = vmatprep.subr.bf16.mxu0 0
        %457 = vmatpush1.bf16.xpose.msra.mxu0 0
        %458 = vmatprep.subr.bf16.mxu0 0
        %459 = vmatpush1.bf16.xpose.msra.mxu0 0
        %460 = vmatprep.subr.bf16.mxu0 0
        %461 = vmatpush1.bf16.xpose.msra.mxu0 0
        %462 = vmatprep.subr.bf16.mxu0 0
        %463 = vmatpush1.bf16.xpose.msra.mxu0 0
        %464 = vmatprep.subr.bf16.mxu0 0
        %465 = vmatpush1.bf16.xpose.msra.mxu0 0
        %466 = vmatprep.mubr.bf16.mxu0 0
        %467 = vmatmul.mubr.bf16.gmra.mrb[0].mxu0 %v429
        %v468 = vpop.f32.mrb[0].mxu0
        %v469 = vadd.f32 0.0, %v468
        %v470 = vpop.f32.mrb[0].mxu0
        %v471 = vpop.f32.mrb[0].mxu0
        %v472 = vpop.f32.mrb[0].mxu0
        %473 = vdwg.mxu0
        %474 = vrot.lane.b32.xlu0 %v423, 120
        %v475 = vpop.permute.xlu0 %474
        %476 = vrot.lane.b32.xlu0 %v423, 88
        %v477 = vpop.permute.xlu0 %476
        %v479 = vsel %vm427, %v475, 0
        %v482 = vsel %vm427, %v477, 0
        %484 = vmatprep.subr.bf16.mxu0 0
        %485 = vmatpush1.bf16.xpose.msra.mxu0 %v482
        %486 = vmatprep.subr.bf16.mxu0 0
        %487 = vmatpush1.bf16.xpose.msra.mxu0 0
        %488 = vmatprep.subr.bf16.mxu0 0
        %489 = vmatpush1.bf16.xpose.msra.mxu0 0
        %490 = vmatprep.subr.bf16.mxu0 0
        %491 = vmatpush1.bf16.xpose.msra.mxu0 0
        %492 = vmatprep.subr.bf16.mxu0 0
        %493 = vmatpush1.bf16.xpose.msra.mxu0 0
        %494 = vmatprep.subr.bf16.mxu0 0
        %495 = vmatpush1.bf16.xpose.msra.mxu0 0
        %496 = vmatprep.subr.bf16.mxu0 0
        %497 = vmatpush1.bf16.xpose.msra.mxu0 0
        %498 = vmatprep.subr.bf16.mxu0 0
        %499 = vmatpush1.bf16.xpose.msra.mxu0 0
        %500 = vmatprep.subr.bf16.mxu0 0
        %501 = vmatpush1.bf16.xpose.msra.mxu0 0
        %502 = vmatprep.subr.bf16.mxu0 0
        %503 = vmatpush1.bf16.xpose.msra.mxu0 0
        %504 = vmatprep.subr.bf16.mxu0 0
        %505 = vmatpush1.bf16.xpose.msra.mxu0 0
        %506 = vmatprep.subr.bf16.mxu0 0
        %507 = vmatpush1.bf16.xpose.msra.mxu0 0
        %508 = vmatprep.subr.bf16.mxu0 0
        %509 = vmatpush1.bf16.xpose.msra.mxu0 0
        %510 = vmatprep.subr.bf16.mxu0 0
        %511 = vmatpush1.bf16.xpose.msra.mxu0 0
        %512 = vmatprep.subr.bf16.mxu0 0
        %513 = vmatpush1.bf16.xpose.msra.mxu0 0
        %514 = vmatprep.subr.bf16.mxu0 0
        %515 = vmatpush1.bf16.xpose.msra.mxu0 0
        %516 = vmatprep.mubr.bf16.mxu0 0
        %517 = vmatmul.mubr.bf16.gmra.mrb[0].mxu0 %v479
        %v518 = vpop.f32.mrb[0].mxu0
        %v519 = vadd.f32 0.0, %v518
        %v520 = vpop.f32.mrb[0].mxu0
        %v521 = vpop.f32.mrb[0].mxu0
        %v522 = vpop.f32.mrb[0].mxu0
        %523 = vdwg.mxu0
        %524 = vrot.lane.b32.xlu0 %v423, 112
        %v525 = vpop.permute.xlu0 %524
        %526 = vrot.lane.b32.xlu0 %v423, 80
        %v527 = vpop.permute.xlu0 %526
        %v529 = vsel %vm427, %v525, 0
        %v532 = vsel %vm427, %v527, 0
        %534 = vmatprep.subr.bf16.mxu0 0
        %535 = vmatpush1.bf16.xpose.msra.mxu0 %v532
        %536 = vmatprep.subr.bf16.mxu0 0
        %537 = vmatpush1.bf16.xpose.msra.mxu0 0
        %538 = vmatprep.subr.bf16.mxu0 0
        %539 = vmatpush1.bf16.xpose.msra.mxu0 0
        %540 = vmatprep.subr.bf16.mxu0 0
        %541 = vmatpush1.bf16.xpose.msra.mxu0 0
        %542 = vmatprep.subr.bf16.mxu0 0
        %543 = vmatpush1.bf16.xpose.msra.mxu0 0
        %544 = vmatprep.subr.bf16.mxu0 0
        %545 = vmatpush1.bf16.xpose.msra.mxu0 0
        %546 = vmatprep.subr.bf16.mxu0 0
        %547 = vmatpush1.bf16.xpose.msra.mxu0 0
        %548 = vmatprep.subr.bf16.mxu0 0
        %549 = vmatpush1.bf16.xpose.msra.mxu0 0
        %550 = vmatprep.subr.bf16.mxu0 0
        %551 = vmatpush1.bf16.xpose.msra.mxu0 0
        %552 = vmatprep.subr.bf16.mxu0 0
        %553 = vmatpush1.bf16.xpose.msra.mxu0 0
        %554 = vmatprep.subr.bf16.mxu0 0
        %555 = vmatpush1.bf16.xpose.msra.mxu0 0
        %556 = vmatprep.subr.bf16.mxu0 0
        %557 = vmatpush1.bf16.xpose.msra.mxu0 0
        %558 = vmatprep.subr.bf16.mxu0 0
        %559 = vmatpush1.bf16.xpose.msra.mxu0 0
        %560 = vmatprep.subr.bf16.mxu0 0
        %561 = vmatpush1.bf16.xpose.msra.mxu0 0
        %562 = vmatprep.subr.bf16.mxu0 0
        %563 = vmatpush1.bf16.xpose.msra.mxu0 0
        %564 = vmatprep.subr.bf16.mxu0 0
        %565 = vmatpush1.bf16.xpose.msra.mxu0 0
        %566 = vmatprep.mubr.bf16.mxu0 0
        %567 = vmatmul.mubr.bf16.gmra.mrb[0].mxu0 %v529
        %v568 = vpop.f32.mrb[0].mxu0
        %v569 = vadd.f32 0.0, %v568
        %v570 = vpop.f32.mrb[0].mxu0
        %v571 = vpop.f32.mrb[0].mxu0
        %v572 = vpop.f32.mrb[0].mxu0
        %573 = vdwg.mxu0
        %574 = vrot.lane.b32.xlu0 %v423, 104
        %v575 = vpop.permute.xlu0 %574
        %576 = vrot.lane.b32.xlu0 %v423, 72
        %v577 = vpop.permute.xlu0 %576
        %v579 = vsel %vm427, %v575, 0
        %v582 = vsel %vm427, %v577, 0
        %584 = vmatprep.subr.bf16.mxu0 0
        %585 = vmatpush1.bf16.xpose.msra.mxu0 %v582
        %586 = vmatprep.subr.bf16.mxu0 0
        %587 = vmatpush1.bf16.xpose.msra.mxu0 0
        %588 = vmatprep.subr.bf16.mxu0 0
        %589 = vmatpush1.bf16.xpose.msra.mxu0 0
        %590 = vmatprep.subr.bf16.mxu0 0
        %591 = vmatpush1.bf16.xpose.msra.mxu0 0
        %592 = vmatprep.subr.bf16.mxu0 0
        %593 = vmatpush1.bf16.xpose.msra.mxu0 0
        %594 = vmatprep.subr.bf16.mxu0 0
        %595 = vmatpush1.bf16.xpose.msra.mxu0 0
        %596 = vmatprep.subr.bf16.mxu0 0
        %597 = vmatpush1.bf16.xpose.msra.mxu0 0
        %598 = vmatprep.subr.bf16.mxu0 0
        %599 = vmatpush1.bf16.xpose.msra.mxu0 0
        %600 = vmatprep.subr.bf16.mxu0 0
        %601 = vmatpush1.bf16.xpose.msra.mxu0 0
        %602 = vmatprep.subr.bf16.mxu0 0
        %603 = vmatpush1.bf16.xpose.msra.mxu0 0
        %604 = vmatprep.subr.bf16.mxu0 0
        %605 = vmatpush1.bf16.xpose.msra.mxu0 0
        %606 = vmatprep.subr.bf16.mxu0 0
        %607 = vmatpush1.bf16.xpose.msra.mxu0 0
        %608 = vmatprep.subr.bf16.mxu0 0
        %609 = vmatpush1.bf16.xpose.msra.mxu0 0
        %610 = vmatprep.subr.bf16.mxu0 0
        %611 = vmatpush1.bf16.xpose.msra.mxu0 0
        %612 = vmatprep.subr.bf16.mxu0 0
        %613 = vmatpush1.bf16.xpose.msra.mxu0 0
        %614 = vmatprep.subr.bf16.mxu0 0
        %615 = vmatpush1.bf16.xpose.msra.mxu0 0
        %616 = vmatprep.mubr.bf16.mxu0 0
        %617 = vmatmul.mubr.bf16.gmra.mrb[0].mxu0 %v579
        %v618 = vpop.f32.mrb[0].mxu0
        %v619 = vadd.f32 0.0, %v618
        %v620 = vpop.f32.mrb[0].mxu0
        %v621 = vpop.f32.mrb[0].mxu0
        %v622 = vpop.f32.mrb[0].mxu0
        %623 = vdwg.mxu0
        %v624 = vmul.f32 %v469, 0.35355338
        %v625 = vmul.f32 %v519, 0.35355338
        %v626 = vmul.f32 %v569, 0.35355338
        %v627 = vmul.f32 %v619, 0.35355338
        %v628 = vadd.f32 %v624, %v422
        %v629 = vadd.f32 %v625, %v422
        %v630 = vadd.f32 %v626, %v422
        %v631 = vadd.f32 %v627, %v422
        %v632 = vsel %vm427, %v628, -inf
        %633 = vmax.xlane.f32.xlu0 %v632
        %v634 = vpop.xlane.xlu0 %633
        %v635 = vsel %vm427, %v629, -inf
        %636 = vmax.xlane.f32.xlu0 %v635
        %v637 = vpop.xlane.xlu0 %636
        %v638 = vsel %vm427, %v630, -inf
        %639 = vmax.xlane.f32.xlu0 %v638
        %v640 = vpop.xlane.xlu0 %639
        %v641 = vsel %vm427, %v631, -inf
        %642 = vmax.xlane.f32.xlu0 %v641
        %v643 = vpop.xlane.xlu0 %642
        %v644 = vsub.f32 %v628, %v634
        %v645 = vsub.f32 %v629, %v637
        %v646 = vsub.f32 %v630, %v640
        %v647 = vsub.f32 %v631, %v643
        %v648 = vmul.f32 %v644, 1.442695
        %v649 = vpow.pop %v648
        %v650 = vmul.f32 %v645, 1.442695
        %v651 = vpow.pop %v650
        %v652 = vmul.f32 %v646, 1.442695
        %v653 = vpow.pop %v652
        %v654 = vmul.f32 %v647, 1.442695
        %v655 = vpow.pop %v654
        %v656 = vsel %vm427, %v649, 0.0
        %657 = vadd.xlane.f32.xlu0 %v656
        %v658 = vpop.xlane.xlu0 %657
        %v659 = vsel %vm427, %v651, 0.0
        %660 = vadd.xlane.f32.xlu0 %v659
        %v661 = vpop.xlane.xlu0 %660
        %v662 = vsel %vm427, %v653, 0.0
        %663 = vadd.xlane.f32.xlu0 %v662
        %v664 = vpop.xlane.xlu0 %663
        %v665 = vsel %vm427, %v655, 0.0
        %666 = vadd.xlane.f32.xlu0 %v665
        %v667 = vpop.xlane.xlu0 %666
        %v668 = vrcp.pop %v658
        %v669 = vmul.f32 %v649, %v668
        %v670 = vrcp.pop %v661
        %v671 = vmul.f32 %v651, %v670
        %v672 = vrcp.pop %v664
        %v673 = vmul.f32 %v653, %v672
        %v674 = vrcp.pop %v667
        %v675 = vmul.f32 %v655, %v674
        %v676 = vpack.c.bf16 %v671, %v669
        %v677 = vpack.c.bf16 %v675, %v673
        %678 = vrot.lane.b32.xlu0 %v423, 64
        %v679 = vpop.permute.xlu0 %678
        %v681 = vsel %vm427, %v676, 0
        %vm683 = vcmask 1043456
        %v685 = vsel %vm683, %v679, 0
        %687 = vmatprep.subr.bf16.mxu0 0
        %688 = vmatpush1.bf16.msra.mxu0 %v685
        %689 = vmatprep.subr.bf16.mxu0 0
        %690 = vmatpush1.bf16.msra.mxu0 0
        %691 = vmatprep.subr.bf16.mxu0 0
        %692 = vmatpush1.bf16.msra.mxu0 0
        %693 = vmatprep.subr.bf16.mxu0 0
        %694 = vmatpush1.bf16.msra.mxu0 0
        %695 = vmatprep.subr.bf16.mxu0 0
        %696 = vmatpush1.bf16.msra.mxu0 0
        %697 = vmatprep.subr.bf16.mxu0 0
        %698 = vmatpush1.bf16.msra.mxu0 0
        %699 = vmatprep.subr.bf16.mxu0 0
        %700 = vmatpush1.bf16.msra.mxu0 0
        %701 = vmatprep.subr.bf16.mxu0 0
        %702 = vmatpush1.bf16.msra.mxu0 0
        %703 = vmatprep.subr.bf16.mxu0 0
        %704 = vmatpush1.bf16.msra.mxu0 0
        %705 = vmatprep.subr.bf16.mxu0 0
        %706 = vmatpush1.bf16.msra.mxu0 0
        %707 = vmatprep.subr.bf16.mxu0 0
        %708 = vmatpush1.bf16.msra.mxu0 0
        %709 = vmatprep.subr.bf16.mxu0 0
        %710 = vmatpush1.bf16.msra.mxu0 0
        %711 = vmatprep.subr.bf16.mxu0 0
        %712 = vmatpush1.bf16.msra.mxu0 0
        %713 = vmatprep.subr.bf16.mxu0 0
        %714 = vmatpush1.bf16.msra.mxu0 0
        %715 = vmatprep.subr.bf16.mxu0 0
        %716 = vmatpush1.bf16.msra.mxu0 0
        %717 = vmatprep.subr.bf16.mxu0 0
        %718 = vmatpush1.bf16.msra.mxu0 0
        %719 = vmatprep.mubr.bf16.mxu0 0
        %720 = vmatmul.mubr.bf16.gmra.mrb[0].mxu0 %v681
        %v721 = vpop.f32.mrb[0].mxu0
        %v722 = vadd.f32 0.0, %v721
        %v723 = vpop.f32.mrb[0].mxu0
        %v724 = vpop.f32.mrb[0].mxu0
        %v725 = vpop.f32.mrb[0].mxu0
        %726 = vdwg.mxu0
        %v728 = vrot.slane %v676, 4
        %729 = vrot.lane.b32.xlu0 %v423, 56
        %v730 = vpop.permute.xlu0 %729
        %v732 = vsel %vm427, %v728, 0
        %v735 = vsel %vm683, %v730, 0
        %737 = vmatprep.subr.bf16.mxu0 0
        %738 = vmatpush1.bf16.msra.mxu0 %v735
        %739 = vmatprep.subr.bf16.mxu0 0
        %740 = vmatpush1.bf16.msra.mxu0 0
        %741 = vmatprep.subr.bf16.mxu0 0
        %742 = vmatpush1.bf16.msra.mxu0 0
        %743 = vmatprep.subr.bf16.mxu0 0
        %744 = vmatpush1.bf16.msra.mxu0 0
        %745 = vmatprep.subr.bf16.mxu0 0
        %746 = vmatpush1.bf16.msra.mxu0 0
        %747 = vmatprep.subr.bf16.mxu0 0
        %748 = vmatpush1.bf16.msra.mxu0 0
        %749 = vmatprep.subr.bf16.mxu0 0
        %750 = vmatpush1.bf16.msra.mxu0 0
        %751 = vmatprep.subr.bf16.mxu0 0
        %752 = vmatpush1.bf16.msra.mxu0 0
        %753 = vmatprep.subr.bf16.mxu0 0
        %754 = vmatpush1.bf16.msra.mxu0 0
        %755 = vmatprep.subr.bf16.mxu0 0
        %756 = vmatpush1.bf16.msra.mxu0 0
        %757 = vmatprep.subr.bf16.mxu0 0
        %758 = vmatpush1.bf16.msra.mxu0 0
        %759 = vmatprep.subr.bf16.mxu0 0
        %760 = vmatpush1.bf16.msra.mxu0 0
        %761 = vmatprep.subr.bf16.mxu0 0
        %762 = vmatpush1.bf16.msra.mxu0 0
        %763 = vmatprep.subr.bf16.mxu0 0
        %764 = vmatpush1.bf16.msra.mxu0 0
        %765 = vmatprep.subr.bf16.mxu0 0
        %766 = vmatpush1.bf16.msra.mxu0 0
        %767 = vmatprep.subr.bf16.mxu0 0
        %768 = vmatpush1.bf16.msra.mxu0 0
        %769 = vmatprep.mubr.bf16.mxu0 0
        %770 = vmatmul.mubr.bf16.gmra.mrb[0].mxu0 %v732
        %v771 = vpop.f32.mrb[0].mxu0
        %v772 = vadd.f32 0.0, %v771
        %v773 = vpop.f32.mrb[0].mxu0
        %v774 = vpop.f32.mrb[0].mxu0
        %v775 = vpop.f32.mrb[0].mxu0
        %776 = vdwg.mxu0
        %777 = vrot.lane.b32.xlu0 %v423, 48
        %v778 = vpop.permute.xlu0 %777
        %v780 = vsel %vm427, %v677, 0
        %v783 = vsel %vm683, %v778, 0
        %785 = vmatprep.subr.bf16.mxu0 0
        %786 = vmatpush1.bf16.msra.mxu0 %v783
        %787 = vmatprep.subr.bf16.mxu0 0
        %788 = vmatpush1.bf16.msra.mxu0 0
        %789 = vmatprep.subr.bf16.mxu0 0
        %790 = vmatpush1.bf16.msra.mxu0 0
        %791 = vmatprep.subr.bf16.mxu0 0
        %792 = vmatpush1.bf16.msra.mxu0 0
        %793 = vmatprep.subr.bf16.mxu0 0
        %794 = vmatpush1.bf16.msra.mxu0 0
        %795 = vmatprep.subr.bf16.mxu0 0
        %796 = vmatpush1.bf16.msra.mxu0 0
        %797 = vmatprep.subr.bf16.mxu0 0
        %798 = vmatpush1.bf16.msra.mxu0 0
        %799 = vmatprep.subr.bf16.mxu0 0
        %800 = vmatpush1.bf16.msra.mxu0 0
        %801 = vmatprep.subr.bf16.mxu0 0
        %802 = vmatpush1.bf16.msra.mxu0 0
        %803 = vmatprep.subr.bf16.mxu0 0
        %804 = vmatpush1.bf16.msra.mxu0 0
        %805 = vmatprep.subr.bf16.mxu0 0
        %806 = vmatpush1.bf16.msra.mxu0 0
        %807 = vmatprep.subr.bf16.mxu0 0
        %808 = vmatpush1.bf16.msra.mxu0 0
        %809 = vmatprep.subr.bf16.mxu0 0
        %810 = vmatpush1.bf16.msra.mxu0 0
        %811 = vmatprep.subr.bf16.mxu0 0
        %812 = vmatpush1.bf16.msra.mxu0 0
        %813 = vmatprep.subr.bf16.mxu0 0
        %814 = vmatpush1.bf16.msra.mxu0 0
        %815 = vmatprep.subr.bf16.mxu0 0
        %816 = vmatpush1.bf16.msra.mxu0 0
        %817 = vmatprep.mubr.bf16.mxu0 0
        %818 = vmatmul.mubr.bf16.gmra.mrb[0].mxu0 %v780
        %v819 = vpop.f32.mrb[0].mxu0
        %v820 = vadd.f32 0.0, %v819
        %v821 = vpop.f32.mrb[0].mxu0
        %v822 = vpop.f32.mrb[0].mxu0
        %v823 = vpop.f32.mrb[0].mxu0
        %824 = vdwg.mxu0
        %v826 = vrot.slane %v677, 4
        %827 = vrot.lane.b32.xlu0 %v423, 40
        %v828 = vpop.permute.xlu0 %827
        %v830 = vsel %vm427, %v826, 0
        %v833 = vsel %vm683, %v828, 0
        %835 = vmatprep.subr.bf16.mxu0 0
        %836 = vmatpush1.bf16.msra.mxu0 %v833
        %837 = vmatprep.subr.bf16.mxu0 0
        %838 = vmatpush1.bf16.msra.mxu0 0
        %839 = vmatprep.subr.bf16.mxu0 0
        %840 = vmatpush1.bf16.msra.mxu0 0
        %841 = vmatprep.subr.bf16.mxu0 0
        %842 = vmatpush1.bf16.msra.mxu0 0
        %843 = vmatprep.subr.bf16.mxu0 0
        %844 = vmatpush1.bf16.msra.mxu0 0
        %845 = vmatprep.subr.bf16.mxu0 0
        %846 = vmatpush1.bf16.msra.mxu0 0
        %847 = vmatprep.subr.bf16.mxu0 0
        %848 = vmatpush1.bf16.msra.mxu0 0
        %849 = vmatprep.subr.bf16.mxu0 0
        %850 = vmatpush1.bf16.msra.mxu0 0
        %851 = vmatprep.subr.bf16.mxu0 0
        %852 = vmatpush1.bf16.msra.mxu0 0
        %853 = vmatprep.subr.bf16.mxu0 0
        %854 = vmatpush1.bf16.msra.mxu0 0
        %855 = vmatprep.subr.bf16.mxu0 0
        %856 = vmatpush1.bf16.msra.mxu0 0
        %857 = vmatprep.subr.bf16.mxu0 0
        %858 = vmatpush1.bf16.msra.mxu0 0
        %859 = vmatprep.subr.bf16.mxu0 0
        %860 = vmatpush1.bf16.msra.mxu0 0
        %861 = vmatprep.subr.bf16.mxu0 0
        %862 = vmatpush1.bf16.msra.mxu0 0
        %863 = vmatprep.subr.bf16.mxu0 0
        %864 = vmatpush1.bf16.msra.mxu0 0
        %865 = vmatprep.subr.bf16.mxu0 0
        %866 = vmatpush1.bf16.msra.mxu0 0
        %867 = vmatprep.mubr.bf16.mxu0 0
        %868 = vmatmul.mubr.bf16.gmra.mrb[0].mxu0 %v830
        %v869 = vpop.f32.mrb[0].mxu0
        %v870 = vadd.f32 0.0, %v869
        %v871 = vpop.f32.mrb[0].mxu0
        %v872 = vpop.f32.mrb[0].mxu0
        %v873 = vpop.f32.mrb[0].mxu0
        %874 = vdwg.mxu0
        %876 = vrot.lane.b32.xlu0 %v772, 8
        %v877 = vpop.permute.xlu0 %876
        %880 = vrot.lane.b32.xlu0 %v820, 16
        %v881 = vpop.permute.xlu0 %880
        %884 = vrot.lane.b32.xlu0 %v870, 24
        %v885 = vpop.permute.xlu0 %884
        %v887 = vsel %vm427, %v722, %v877
        %vm888 = vcmask 130048
        %v889 = vsel %vm888, %v887, %v881
        %vm890 = vcmask 195584
        %v891 = vsel %vm890, %v889, %v885
        %v892 = vpack.c.bf16 %v891, %v891
        %893 = vrot.lane.b32.xlu0 %v375, 32
        %v894 = vpop.permute.xlu0 %893
        %895 = vrot.lane.b32.xlu0 %v376, 32
        %v896 = vpop.permute.xlu0 %895
        %900 = vrot.lane.b32.xlu0 %v355, 32
        %v901 = vpop.permute.xlu0 %900
        %v904 = vsel %vm330, %v892, 0
        %906 = vmatprep.subr.bf16.mxu0 0
        %907 = vmatpush1.bf16.msra.mxu0 %v894
        %908 = vmatprep.subr.bf16.mxu0 0
        %909 = vmatpush1.bf16.msra.mxu0 %v896
        %910 = vmatprep.subr.bf16.mxu0 0
        %911 = vmatpush1.bf16.msra.mxu0 0
        %912 = vmatprep.subr.bf16.mxu0 0
        %913 = vmatpush1.bf16.msra.mxu0 0
        %914 = vmatprep.subr.bf16.mxu0 0
        %915 = vmatpush1.bf16.msra.mxu0 0
        %916 = vmatprep.subr.bf16.mxu0 0
        %917 = vmatpush1.bf16.msra.mxu0 0
        %918 = vmatprep.subr.bf16.mxu0 0
        %919 = vmatpush1.bf16.msra.mxu0 0
        %920 = vmatprep.subr.bf16.mxu0 0
        %921 = vmatpush1.bf16.msra.mxu0 0
        %922 = vmatprep.subr.bf16.mxu0 0
        %923 = vmatpush1.bf16.msra.mxu0 0
        %924 = vmatprep.subr.bf16.mxu0 0
        %925 = vmatpush1.bf16.msra.mxu0 0
        %926 = vmatprep.subr.bf16.mxu0 0
        %927 = vmatpush1.bf16.msra.mxu0 0
        %928 = vmatprep.subr.bf16.mxu0 0
        %929 = vmatpush1.bf16.msra.mxu0 0
        %930 = vmatprep.subr.bf16.mxu0 0
        %931 = vmatpush1.bf16.msra.mxu0 0
        %932 = vmatprep.subr.bf16.mxu0 0
        %933 = vmatpush1.bf16.msra.mxu0 0
        %934 = vmatprep.subr.bf16.mxu0 0
        %935 = vmatpush1.bf16.msra.mxu0 0
        %936 = vmatprep.subr.bf16.mxu0 0
        %937 = vmatpush1.bf16.msra.mxu0 0
        %938 = vmatprep.mubr.bf16.mxu0 0
        %939 = vmatmul.mubr.bf16.gmra.mrb[0].mxu0 %v904
        %v940 = vpop.f32.mrb[0].mxu0
        %v941 = vadd.f32 %v901, %v940
        %v942 = vpop.f32.mrb[0].mxu0
        %v943 = vpop.f32.mrb[0].mxu0
        %v944 = vpop.f32.mrb[0].mxu0
        %945 = vdwg.mxu0
        %v946 = vadd.f32 %v316, %v941
        %v947 = vsel %vm330, %v946, 0.0
        %948 = vadd.xlane.f32.xlu0 %v947
        %v949 = vpop.xlane.xlu0 %948
        %v950 = vmul.f32 %v949, %v334
        %v951 = vsub.f32 %v946, %v950
        %v952 = vmul.f32 %v951, %v951
        %v953 = vsel %vm330, %v952, 0.0
        %954 = vadd.xlane.f32.xlu0 %v953
        %v955 = vpop.xlane.xlu0 %954
        %v956 = vmul.f32 %v955, 0.032258064
        %v957 = vrsqrt.pop %v956
        %v958 = vmul.f32 %v956, %v957
        %vm959 = vcmp.eq.f32.partialorder %v956, inf
        %v960 = vsel %vm959, %v956, %v958
        %vm961 = vcmp.eq.f32.partialorder %v956, 0.0
        %v962 = vand.u32 %v956, 2147483648
        %v963 = vsel %vm961, %v962, %v960
        %v964 = vadd.f32 %v963, 1e-06
        %v965 = vrcp.pop %v964
        %v966 = vmul.f32 %v951, %v965
        %968 = vrot.lane.b32.xlu0 %v966, 32
        %v969 = vpop.permute.xlu0 %968
        %v971 = vmul.f32 %v355, %v969
        %v972 = vadd.f32 %v971, %v360
        %v973 = vpack.c.bf16 %v972, %v972
        %975 = vrot.lane.b32.xlu0 %v973, 96
        %v976 = vpop.permute.xlu0 %975
        %v978 = vsel %vm330, %v976, 0
        %980 = vmatprep.subr.bf16.mxu0 0
        %981 = vmatpush1.bf16.msra.mxu0 %v375
        %982 = vmatprep.subr.bf16.mxu0 0
        %983 = vmatpush1.bf16.msra.mxu0 %v376
        %984 = vmatprep.subr.bf16.mxu0 0
        %985 = vmatpush1.bf16.msra.mxu0 0
        %986 = vmatprep.subr.bf16.mxu0 0
        %987 = vmatpush1.bf16.msra.mxu0 0
        %988 = vmatprep.subr.bf16.mxu0 0
        %989 = vmatpush1.bf16.msra.mxu0 0
        %990 = vmatprep.subr.bf16.mxu0 0
        %991 = vmatpush1.bf16.msra.mxu0 0
        %992 = vmatprep.subr.bf16.mxu0 0
        %993 = vmatpush1.bf16.msra.mxu0 0
        %994 = vmatprep.subr.bf16.mxu0 0
        %995 = vmatpush1.bf16.msra.mxu0 0
        %996 = vmatprep.subr.bf16.mxu0 0
        %997 = vmatpush1.bf16.msra.mxu0 0
        %998 = vmatprep.subr.bf16.mxu0 0
        %999 = vmatpush1.bf16.msra.mxu0 0
        %1000 = vmatprep.subr.bf16.mxu0 0
        %1001 = vmatpush1.bf16.msra.mxu0 0
        %1002 = vmatprep.subr.bf16.mxu0 0
        %1003 = vmatpush1.bf16.msra.mxu0 0
        %1004 = vmatprep.subr.bf16.mxu0 0
        %1005 = vmatpush1.bf16.msra.mxu0 0
        %1006 = vmatprep.subr.bf16.mxu0 0
        %1007 = vmatpush1.bf16.msra.mxu0 0
        %1008 = vmatprep.subr.bf16.mxu0 0
        %1009 = vmatpush1.bf16.msra.mxu0 0
        %1010 = vmatprep.subr.bf16.mxu0 0
        %1011 = vmatpush1.bf16.msra.mxu0 0
        %1012 = vmatprep.mubr.bf16.mxu0 0
        %1013 = vmatmul.mubr.bf16.gmra.mrb[0].mxu0 %v978
        %v1014 = vpop.f32.mrb[0].mxu0
        %v1015 = vadd.f32 %v366, %v1014
        %v1016 = vpop.f32.mrb[0].mxu0
        %v1017 = vpop.f32.mrb[0].mxu0
        %v1018 = vpop.f32.mrb[0].mxu0
        %1019 = vdwg.mxu0
        %v1020 = vpack.c.bf16 %v317, %v317
        %1021 = vrot.lane.b32.xlu0 %v375, 96
        %v1022 = vpop.permute.xlu0 %1021
        %1023 = vrot.lane.b32.xlu0 %v376, 96
        %v1024 = vpop.permute.xlu0 %1023
        %1028 = vrot.lane.b32.xlu0 %v366, 96
        %v1029 = vpop.permute.xlu0 %1028
        %v1032 = vsel %vm330, %v1020, 0
        %1034 = vmatprep.subr.bf16.mxu0 0
        %1035 = vmatpush1.bf16.msra.mxu0 %v1022
        %1036 = vmatprep.subr.bf16.mxu0 0
        %1037 = vmatpush1.bf16.msra.mxu0 %v1024
        %1038 = vmatprep.subr.bf16.mxu0 0
        %1039 = vmatpush1.bf16.msra.mxu0 0
        %1040 = vmatprep.subr.bf16.mxu0 0
        %1041 = vmatpush1.bf16.msra.mxu0 0
        %1042 = vmatprep.subr.bf16.mxu0 0
        %1043 = vmatpush1.bf16.msra.mxu0 0
        %1044 = vmatprep.subr.bf16.mxu0 0
        %1045 = vmatpush1.bf16.msra.mxu0 0
        %1046 = vmatprep.subr.bf16.mxu0 0
        %1047 = vmatpush1.bf16.msra.mxu0 0
        %1048 = vmatprep.subr.bf16.mxu0 0
        %1049 = vmatpush1.bf16.msra.mxu0 0
        %1050 = vmatprep.subr.bf16.mxu0 0
        %1051 = vmatpush1.bf16.msra.mxu0 0
        %1052 = vmatprep.subr.bf16.mxu0 0
        %1053 = vmatpush1.bf16.msra.mxu0 0
        %1054 = vmatprep.subr.bf16.mxu0 0
        %1055 = vmatpush1.bf16.msra.mxu0 0
        %1056 = vmatprep.subr.bf16.mxu0 0
        %1057 = vmatpush1.bf16.msra.mxu0 0
        %1058 = vmatprep.subr.bf16.mxu0 0
        %1059 = vmatpush1.bf16.msra.mxu0 0
        %1060 = vmatprep.subr.bf16.mxu0 0
        %1061 = vmatpush1.bf16.msra.mxu0 0
        %1062 = vmatprep.subr.bf16.mxu0 0
        %1063 = vmatpush1.bf16.msra.mxu0 0
        %1064 = vmatprep.subr.bf16.mxu0 0
        %1065 = vmatpush1.bf16.msra.mxu0 0
        %1066 = vmatprep.mubr.bf16.mxu0 0
        %1067 = vmatmul.mubr.bf16.gmra.mrb[0].mxu0 %v1032
        %v1068 = vpop.f32.mrb[0].mxu0
        %v1069 = vadd.f32 %v1029, %v1068
        %v1070 = vpop.f32.mrb[0].mxu0
        %v1071 = vpop.f32.mrb[0].mxu0
        %v1072 = vpop.f32.mrb[0].mxu0
        %1073 = vdwg.mxu0
        %v1074 = vld [vmem:[%s310] sm:$0x1]
        %v1075 = vpack.c.bf16 %v1015, %v1015
        %v1076 = vpack.c.bf16 %v1069, %v1069
        %v1078 = vsel %vm427, %v1075, 0
        %v1081 = vsel %vm427, %v1076, 0
        %1083 = vmatprep.subr.bf16.mxu0 0
        %1084 = vmatpush1.bf16.xpose.msra.mxu0 %v1081
        %1085 = vmatprep.subr.bf16.mxu0 0
        %1086 = vmatpush1.bf16.xpose.msra.mxu0 0
        %1087 = vmatprep.subr.bf16.mxu0 0
        %1088 = vmatpush1.bf16.xpose.msra.mxu0 0
        %1089 = vmatprep.subr.bf16.mxu0 0
        %1090 = vmatpush1.bf16.xpose.msra.mxu0 0
        %1091 = vmatprep.subr.bf16.mxu0 0
        %1092 = vmatpush1.bf16.xpose.msra.mxu0 0
        %1093 = vmatprep.subr.bf16.mxu0 0
        %1094 = vmatpush1.bf16.xpose.msra.mxu0 0
        %1095 = vmatprep.subr.bf16.mxu0 0
        %1096 = vmatpush1.bf16.xpose.msra.mxu0 0
        %1097 = vmatprep.subr.bf16.mxu0 0
        %1098 = vmatpush1.bf16.xpose.msra.mxu0 0
        %1099 = vmatprep.subr.bf16.mxu0 0
        %1100 = vmatpush1.bf16.xpose.msra.mxu0 0
        %1101 = vmatprep.subr.bf16.mxu0 0
        %1102 = vmatpush1.bf16.xpose.msra.mxu0 0
        %1103 = vmatprep.subr.bf16.mxu0 0
        %1104 = vmatpush1.bf16.xpose.msra.mxu0 0
        %1105 = vmatprep.subr.bf16.mxu0 0
        %1106 = vmatpush1.bf16.xpose.msra.mxu0 0
        %1107 = vmatprep.subr.bf16.mxu0 0
        %1108 = vmatpush1.bf16.xpose.msra.mxu0 0
        %1109 = vmatprep.subr.bf16.mxu0 0
        %1110 = vmatpush1.bf16.xpose.msra.mxu0 0
        %1111 = vmatprep.subr.bf16.mxu0 0
        %1112 = vmatpush1.bf16.xpose.msra.mxu0 0
        %1113 = vmatprep.subr.bf16.mxu0 0
        %1114 = vmatpush1.bf16.xpose.msra.mxu0 0
        %1115 = vmatprep.mubr.bf16.mxu0 0
        %1116 = vmatmul.mubr.bf16.gmra.mrb[0].mxu0 %v1078
        %v1117 = vpop.f32.mrb[0].mxu0
        %v1118 = vadd.f32 0.0, %v1117
        %v1119 = vpop.f32.mrb[0].mxu0
        %v1120 = vpop.f32.mrb[0].mxu0
        %v1121 = vpop.f32.mrb[0].mxu0
        %1122 = vdwg.mxu0
        %1124 = vrot.lane.b32.xlu0 %v1075, 120
        %v1125 = vpop.permute.xlu0 %1124
        %1127 = vrot.lane.b32.xlu0 %v1076, 120
        %v1128 = vpop.permute.xlu0 %1127
        %v1130 = vsel %vm427, %v1125, 0
        %v1133 = vsel %vm427, %v1128, 0
        %1135 = vmatprep.subr.bf16.mxu0 0
        %1136 = vmatpush1.bf16.xpose.msra.mxu0 %v1133
        %1137 = vmatprep.subr.bf16.mxu0 0
        %1138 = vmatpush1.bf16.xpose.msra.mxu0 0
        %1139 = vmatprep.subr.bf16.mxu0 0
        %1140 = vmatpush1.bf16.xpose.msra.mxu0 0
        %1141 = vmatprep.subr.bf16.mxu0 0
        %1142 = vmatpush1.bf16.xpose.msra.mxu0 0
        %1143 = vmatprep.subr.bf16.mxu0 0
        %1144 = vmatpush1.bf16.xpose.msra.mxu0 0
        %1145 = vmatprep.subr.bf16.mxu0 0
        %1146 = vmatpush1.bf16.xpose.msra.mxu0 0
        %1147 = vmatprep.subr.bf16.mxu0 0
        %1148 = vmatpush1.bf16.xpose.msra.mxu0 0
        %1149 = vmatprep.subr.bf16.mxu0 0
        %1150 = vmatpush1.bf16.xpose.msra.mxu0 0
        %1151 = vmatprep.subr.bf16.mxu0 0
        %1152 = vmatpush1.bf16.xpose.msra.mxu0 0
        %1153 = vmatprep.subr.bf16.mxu0 0
        %1154 = vmatpush1.bf16.xpose.msra.mxu0 0
        %1155 = vmatprep.subr.bf16.mxu0 0
        %1156 = vmatpush1.bf16.xpose.msra.mxu0 0
        %1157 = vmatprep.subr.bf16.mxu0 0
        %1158 = vmatpush1.bf16.xpose.msra.mxu0 0
        %1159 = vmatprep.subr.bf16.mxu0 0
        %1160 = vmatpush1.bf16.xpose.msra.mxu0 0
        %1161 = vmatprep.subr.bf16.mxu0 0
        %1162 = vmatpush1.bf16.xpose.msra.mxu0 0
        %1163 = vmatprep.subr.bf16.mxu0 0
        %1164 = vmatpush1.bf16.xpose.msra.mxu0 0
        %1165 = vmatprep.subr.bf16.mxu0 0
        %1166 = vmatpush1.bf16.xpose.msra.mxu0 0
        %1167 = vmatprep.mubr.bf16.mxu0 0
        %1168 = vmatmul.mubr.bf16.gmra.mrb[0].mxu0 %v1130
        %v1169 = vpop.f32.mrb[0].mxu0
        %v1170 = vadd.f32 0.0, %v1169
        %v1171 = vpop.f32.mrb[0].mxu0
        %v1172 = vpop.f32.mrb[0].mxu0
        %v1173 = vpop.f32.mrb[0].mxu0
        %1174 = vdwg.mxu0
        %1175 = vrot.lane.b32.xlu0 %v1075, 112
        %v1176 = vpop.permute.xlu0 %1175
        %1177 = vrot.lane.b32.xlu0 %v1076, 112
        %v1178 = vpop.permute.xlu0 %1177
        %v1180 = vsel %vm427, %v1176, 0
        %v1183 = vsel %vm427, %v1178, 0
        %1185 = vmatprep.subr.bf16.mxu0 0
        %1186 = vmatpush1.bf16.xpose.msra.mxu0 %v1183
        %1187 = vmatprep.subr.bf16.mxu0 0
        %1188 = vmatpush1.bf16.xpose.msra.mxu0 0
        %1189 = vmatprep.subr.bf16.mxu0 0
        %1190 = vmatpush1.bf16.xpose.msra.mxu0 0
        %1191 = vmatprep.subr.bf16.mxu0 0
        %1192 = vmatpush1.bf16.xpose.msra.mxu0 0
        %1193 = vmatprep.subr.bf16.mxu0 0
        %1194 = vmatpush1.bf16.xpose.msra.mxu0 0
        %1195 = vmatprep.subr.bf16.mxu0 0
        %1196 = vmatpush1.bf16.xpose.msra.mxu0 0
        %1197 = vmatprep.subr.bf16.mxu0 0
        %1198 = vmatpush1.bf16.xpose.msra.mxu0 0
        %1199 = vmatprep.subr.bf16.mxu0 0
        %1200 = vmatpush1.bf16.xpose.msra.mxu0 0
        %1201 = vmatprep.subr.bf16.mxu0 0
        %1202 = vmatpush1.bf16.xpose.msra.mxu0 0
        %1203 = vmatprep.subr.bf16.mxu0 0
        %1204 = vmatpush1.bf16.xpose.msra.mxu0 0
        %1205 = vmatprep.subr.bf16.mxu0 0
        %1206 = vmatpush1.bf16.xpose.msra.mxu0 0
        %1207 = vmatprep.subr.bf16.mxu0 0
        %1208 = vmatpush1.bf16.xpose.msra.mxu0 0
        %1209 = vmatprep.subr.bf16.mxu0 0
        %1210 = vmatpush1.bf16.xpose.msra.mxu0 0
        %1211 = vmatprep.subr.bf16.mxu0 0
        %1212 = vmatpush1.bf16.xpose.msra.mxu0 0
        %1213 = vmatprep.subr.bf16.mxu0 0
        %1214 = vmatpush1.bf16.xpose.msra.mxu0 0
        %1215 = vmatprep.subr.bf16.mxu0 0
        %1216 = vmatpush1.bf16.xpose.msra.mxu0 0
        %1217 = vmatprep.mubr.bf16.mxu0 0
        %1218 = vmatmul.mubr.bf16.gmra.mrb[0].mxu0 %v1180
        %v1219 = vpop.f32.mrb[0].mxu0
        %v1220 = vadd.f32 0.0, %v1219
        %v1221 = vpop.f32.mrb[0].mxu0
        %v1222 = vpop.f32.mrb[0].mxu0
        %v1223 = vpop.f32.mrb[0].mxu0
        %1224 = vdwg.mxu0
        %1225 = vrot.lane.b32.xlu0 %v1075, 104
        %v1226 = vpop.permute.xlu0 %1225
        %1227 = vrot.lane.b32.xlu0 %v1076, 104
        %v1228 = vpop.permute.xlu0 %1227
        %v1230 = vsel %vm427, %v1226, 0
        %v1233 = vsel %vm427, %v1228, 0
        %1235 = vmatprep.subr.bf16.mxu0 0
        %1236 = vmatpush1.bf16.xpose.msra.mxu0 %v1233
        %1237 = vmatprep.subr.bf16.mxu0 0
        %1238 = vmatpush1.bf16.xpose.msra.mxu0 0
        %1239 = vmatprep.subr.bf16.mxu0 0
        %1240 = vmatpush1.bf16.xpose.msra.mxu0 0
        %1241 = vmatprep.subr.bf16.mxu0 0
        %1242 = vmatpush1.bf16.xpose.msra.mxu0 0
        %1243 = vmatprep.subr.bf16.mxu0 0
        %1244 = vmatpush1.bf16.xpose.msra.mxu0 0
        %1245 = vmatprep.subr.bf16.mxu0 0
        %1246 = vmatpush1.bf16.xpose.msra.mxu0 0
        %1247 = vmatprep.subr.bf16.mxu0 0
        %1248 = vmatpush1.bf16.xpose.msra.mxu0 0
        %1249 = vmatprep.subr.bf16.mxu0 0
        %1250 = vmatpush1.bf16.xpose.msra.mxu0 0
        %1251 = vmatprep.subr.bf16.mxu0 0
        %1252 = vmatpush1.bf16.xpose.msra.mxu0 0
        %1253 = vmatprep.subr.bf16.mxu0 0
        %1254 = vmatpush1.bf16.xpose.msra.mxu0 0
        %1255 = vmatprep.subr.bf16.mxu0 0
        %1256 = vmatpush1.bf16.xpose.msra.mxu0 0
        %1257 = vmatprep.subr.bf16.mxu0 0
        %1258 = vmatpush1.bf16.xpose.msra.mxu0 0
        %1259 = vmatprep.subr.bf16.mxu0 0
        %1260 = vmatpush1.bf16.xpose.msra.mxu0 0
        %1261 = vmatprep.subr.bf16.mxu0 0
        %1262 = vmatpush1.bf16.xpose.msra.mxu0 0
        %1263 = vmatprep.subr.bf16.mxu0 0
        %1264 = vmatpush1.bf16.xpose.msra.mxu0 0
        %1265 = vmatprep.subr.bf16.mxu0 0
        %1266 = vmatpush1.bf16.xpose.msra.mxu0 0
        %1267 = vmatprep.mubr.bf16.mxu0 0
        %1268 = vmatmul.mubr.bf16.gmra.mrb[0].mxu0 %v1230
        %v1269 = vpop.f32.mrb[0].mxu0
        %v1270 = vadd.f32 0.0, %v1269
        %v1271 = vpop.f32.mrb[0].mxu0
        %v1272 = vpop.f32.mrb[0].mxu0
        %v1273 = vpop.f32.mrb[0].mxu0
        %1274 = vdwg.mxu0
        %v1275 = vmul.f32 %v1118, 0.35355338
        %v1276 = vmul.f32 %v1170, 0.35355338
        %v1277 = vmul.f32 %v1220, 0.35355338
        %v1278 = vmul.f32 %v1270, 0.35355338
        %v1280 = vlaneseq
        %v1281 = vshrl.u32 %v1280, 7
        %v1282 = vsub.s32 0, %v1281
        %v1283 = vrot.slane %v1074, %v1282
        %v1285 = vadd.f32 %v1275, %v1283
        %v1286 = vadd.f32 %v1276, %v1283
        %v1287 = vadd.f32 %v1277, %v1283
        %v1288 = vadd.f32 %v1278, %v1283
        %v1289 = vsel %vm427, %v1285, -inf
        %1290 = vmax.xlane.f32.xlu0 %v1289
        %v1291 = vpop.xlane.xlu0 %1290
        %v1292 = vsel %vm427, %v1286, -inf
        %1293 = vmax.xlane.f32.xlu0 %v1292
        %v1294 = vpop.xlane.xlu0 %1293
        %v1295 = vsel %vm427, %v1287, -inf
        %1296 = vmax.xlane.f32.xlu0 %v1295
        %v1297 = vpop.xlane.xlu0 %1296
        %v1298 = vsel %vm427, %v1288, -inf
        %1299 = vmax.xlane.f32.xlu0 %v1298
        %v1300 = vpop.xlane.xlu0 %1299
        %v1301 = vsub.f32 %v1285, %v1291
        %v1302 = vsub.f32 %v1286, %v1294
        %v1303 = vsub.f32 %v1287, %v1297
        %v1304 = vsub.f32 %v1288, %v1300
        %v1305 = vmul.f32 %v1301, 1.442695
        %v1306 = vpow.pop %v1305
        %v1307 = vmul.f32 %v1302, 1.442695
        %v1308 = vpow.pop %v1307
        %v1309 = vmul.f32 %v1303, 1.442695
        %v1310 = vpow.pop %v1309
        %v1311 = vmul.f32 %v1304, 1.442695
        %v1312 = vpow.pop %v1311
        %v1313 = vsel %vm427, %v1306, 0.0
        %1314 = vadd.xlane.f32.xlu0 %v1313
        %v1315 = vpop.xlane.xlu0 %1314
        %v1316 = vsel %vm427, %v1308, 0.0
        %1317 = vadd.xlane.f32.xlu0 %v1316
        %v1318 = vpop.xlane.xlu0 %1317
        %v1319 = vsel %vm427, %v1310, 0.0
        %1320 = vadd.xlane.f32.xlu0 %v1319
        %v1321 = vpop.xlane.xlu0 %1320
        %v1322 = vsel %vm427, %v1312, 0.0
        %1323 = vadd.xlane.f32.xlu0 %v1322
        %v1324 = vpop.xlane.xlu0 %1323
        %v1325 = vrcp.pop %v1315
        %v1326 = vmul.f32 %v1306, %v1325
        %v1327 = vrcp.pop %v1318
        %v1328 = vmul.f32 %v1308, %v1327
        %v1329 = vrcp.pop %v1321
        %v1330 = vmul.f32 %v1310, %v1329
        %v1331 = vrcp.pop %v1324
        %v1332 = vmul.f32 %v1312, %v1331
        %v1333 = vpack.c.bf16 %v1328, %v1326
        %v1334 = vpack.c.bf16 %v1332, %v1330
        %1335 = vrot.lane.b32.xlu0 %v1076, 96
        %v1336 = vpop.permute.xlu0 %1335
        %v1338 = vsel %vm427, %v1333, 0
        %v1341 = vsel %vm683, %v1336, 0
        %1343 = vmatprep.subr.bf16.mxu0 0
        %1344 = vmatpush1.bf16.msra.mxu0 %v1341
        %1345 = vmatprep.subr.bf16.mxu0 0
        %1346 = vmatpush1.bf16.msra.mxu0 0
        %1347 = vmatprep.subr.bf16.mxu0 0
        %1348 = vmatpush1.bf16.msra.mxu0 0
        %1349 = vmatprep.subr.bf16.mxu0 0
        %1350 = vmatpush1.bf16.msra.mxu0 0
        %1351 = vmatprep.subr.bf16.mxu0 0
        %1352 = vmatpush1.bf16.msra.mxu0 0
        %1353 = vmatprep.subr.bf16.mxu0 0
        %1354 = vmatpush1.bf16.msra.mxu0 0
        %1355 = vmatprep.subr.bf16.mxu0 0
        %1356 = vmatpush1.bf16.msra.mxu0 0
        %1357 = vmatprep.subr.bf16.mxu0 0
        %1358 = vmatpush1.bf16.msra.mxu0 0
        %1359 = vmatprep.subr.bf16.mxu0 0
        %1360 = vmatpush1.bf16.msra.mxu0 0
        %1361 = vmatprep.subr.bf16.mxu0 0
        %1362 = vmatpush1.bf16.msra.mxu0 0
        %1363 = vmatprep.subr.bf16.mxu0 0
        %1364 = vmatpush1.bf16.msra.mxu0 0
        %1365 = vmatprep.subr.bf16.mxu0 0
        %1366 = vmatpush1.bf16.msra.mxu0 0
        %1367 = vmatprep.subr.bf16.mxu0 0
        %1368 = vmatpush1.bf16.msra.mxu0 0
        %1369 = vmatprep.subr.bf16.mxu0 0
        %1370 = vmatpush1.bf16.msra.mxu0 0
        %1371 = vmatprep.subr.bf16.mxu0 0
        %1372 = vmatpush1.bf16.msra.mxu0 0
        %1373 = vmatprep.subr.bf16.mxu0 0
        %1374 = vmatpush1.bf16.msra.mxu0 0
        %1375 = vmatprep.mubr.bf16.mxu0 0
        %1376 = vmatmul.mubr.bf16.gmra.mrb[0].mxu0 %v1338
        %v1377 = vpop.f32.mrb[0].mxu0
        %v1378 = vadd.f32 0.0, %v1377
        %v1379 = vpop.f32.mrb[0].mxu0
        %v1380 = vpop.f32.mrb[0].mxu0
        %v1381 = vpop.f32.mrb[0].mxu0
        %1382 = vdwg.mxu0
        %v1384 = vrot.slane %v1333, 4
        %1385 = vrot.lane.b32.xlu0 %v1076, 88
        %v1386 = vpop.permute.xlu0 %1385
        %v1388 = vsel %vm427, %v1384, 0
        %v1391 = vsel %vm683, %v1386, 0
        %1393 = vmatprep.subr.bf16.mxu0 0
        %1394 = vmatpush1.bf16.msra.mxu0 %v1391
        %1395 = vmatprep.subr.bf16.mxu0 0
        %1396 = vmatpush1.bf16.msra.mxu0 0
        %1397 = vmatprep.subr.bf16.mxu0 0
        %1398 = vmatpush1.bf16.msra.mxu0 0
        %1399 = vmatprep.subr.bf16.mxu0 0
        %1400 = vmatpush1.bf16.msra.mxu0 0
        %1401 = vmatprep.subr.bf16.mxu0 0
        %1402 = vmatpush1.bf16.msra.mxu0 0
        %1403 = vmatprep.subr.bf16.mxu0 0
        %1404 = vmatpush1.bf16.msra.mxu0 0
        %1405 = vmatprep.subr.bf16.mxu0 0
        %1406 = vmatpush1.bf16.msra.mxu0 0
        %1407 = vmatprep.subr.bf16.mxu0 0
        %1408 = vmatpush1.bf16.msra.mxu0 0
        %1409 = vmatprep.subr.bf16.mxu0 0
        %1410 = vmatpush1.bf16.msra.mxu0 0
        %1411 = vmatprep.subr.bf16.mxu0 0
        %1412 = vmatpush1.bf16.msra.mxu0 0
        %1413 = vmatprep.subr.bf16.mxu0 0
        %1414 = vmatpush1.bf16.msra.mxu0 0
        %1415 = vmatprep.subr.bf16.mxu0 0
        %1416 = vmatpush1.bf16.msra.mxu0 0
        %1417 = vmatprep.subr.bf16.mxu0 0
        %1418 = vmatpush1.bf16.msra.mxu0 0
        %1419 = vmatprep.subr.bf16.mxu0 0
        %1420 = vmatpush1.bf16.msra.mxu0 0
        %1421 = vmatprep.subr.bf16.mxu0 0
        %1422 = vmatpush1.bf16.msra.mxu0 0
        %1423 = vmatprep.subr.bf16.mxu0 0
        %1424 = vmatpush1.bf16.msra.mxu0 0
        %1425 = vmatprep.mubr.bf16.mxu0 0
        %1426 = vmatmul.mubr.bf16.gmra.mrb[0].mxu0 %v1388
        %v1427 = vpop.f32.mrb[0].mxu0
        %v1428 = vadd.f32 0.0, %v1427
        %v1429 = vpop.f32.mrb[0].mxu0
        %v1430 = vpop.f32.mrb[0].mxu0
        %v1431 = vpop.f32.mrb[0].mxu0
        %1432 = vdwg.mxu0
        %1433 = vrot.lane.b32.xlu0 %v1076, 80
        %v1434 = vpop.permute.xlu0 %1433
        %v1436 = vsel %vm427, %v1334, 0
        %v1439 = vsel %vm683, %v1434, 0
        %1441 = vmatprep.subr.bf16.mxu0 0
        %1442 = vmatpush1.bf16.msra.mxu0 %v1439
        %1443 = vmatprep.subr.bf16.mxu0 0
        %1444 = vmatpush1.bf16.msra.mxu0 0
        %1445 = vmatprep.subr.bf16.mxu0 0
        %1446 = vmatpush1.bf16.msra.mxu0 0
        %1447 = vmatprep.subr.bf16.mxu0 0
        %1448 = vmatpush1.bf16.msra.mxu0 0
        %1449 = vmatprep.subr.bf16.mxu0 0
        %1450 = vmatpush1.bf16.msra.mxu0 0
        %1451 = vmatprep.subr.bf16.mxu0 0
        %1452 = vmatpush1.bf16.msra.mxu0 0
        %1453 = vmatprep.subr.bf16.mxu0 0
        %1454 = vmatpush1.bf16.msra.mxu0 0
        %1455 = vmatprep.subr.bf16.mxu0 0
        %1456 = vmatpush1.bf16.msra.mxu0 0
        %1457 = vmatprep.subr.bf16.mxu0 0
        %1458 = vmatpush1.bf16.msra.mxu0 0
        %1459 = vmatprep.subr.bf16.mxu0 0
        %1460 = vmatpush1.bf16.msra.mxu0 0
        %1461 = vmatprep.subr.bf16.mxu0 0
        %1462 = vmatpush1.bf16.msra.mxu0 0
        %1463 = vmatprep.subr.bf16.mxu0 0
        %1464 = vmatpush1.bf16.msra.mxu0 0
        %1465 = vmatprep.subr.bf16.mxu0 0
        %1466 = vmatpush1.bf16.msra.mxu0 0
        %1467 = vmatprep.subr.bf16.mxu0 0
        %1468 = vmatpush1.bf16.msra.mxu0 0
        %1469 = vmatprep.subr.bf16.mxu0 0
        %1470 = vmatpush1.bf16.msra.mxu0 0
        %1471 = vmatprep.subr.bf16.mxu0 0
        %1472 = vmatpush1.bf16.msra.mxu0 0
        %1473 = vmatprep.mubr.bf16.mxu0 0
        %1474 = vmatmul.mubr.bf16.gmra.mrb[0].mxu0 %v1436
        %v1475 = vpop.f32.mrb[0].mxu0
        %v1476 = vadd.f32 0.0, %v1475
        %v1477 = vpop.f32.mrb[0].mxu0
        %v1478 = vpop.f32.mrb[0].mxu0
        %v1479 = vpop.f32.mrb[0].mxu0
        %1480 = vdwg.mxu0
        %v1482 = vrot.slane %v1334, 4
        %1483 = vrot.lane.b32.xlu0 %v1076, 72
        %v1484 = vpop.permute.xlu0 %1483
        %v1486 = vsel %vm427, %v1482, 0
        %v1489 = vsel %vm683, %v1484, 0
        %1491 = vmatprep.subr.bf16.mxu0 0
        %1492 = vmatpush1.bf16.msra.mxu0 %v1489
        %1493 = vmatprep.subr.bf16.mxu0 0
        %1494 = vmatpush1.bf16.msra.mxu0 0
        %1495 = vmatprep.subr.bf16.mxu0 0
        %1496 = vmatpush1.bf16.msra.mxu0 0
        %1497 = vmatprep.subr.bf16.mxu0 0
        %1498 = vmatpush1.bf16.msra.mxu0 0
        %1499 = vmatprep.subr.bf16.mxu0 0
        %1500 = vmatpush1.bf16.msra.mxu0 0
        %1501 = vmatprep.subr.bf16.mxu0 0
        %1502 = vmatpush1.bf16.msra.mxu0 0
        %1503 = vmatprep.subr.bf16.mxu0 0
        %1504 = vmatpush1.bf16.msra.mxu0 0
        %1505 = vmatprep.subr.bf16.mxu0 0
        %1506 = vmatpush1.bf16.msra.mxu0 0
        %1507 = vmatprep.subr.bf16.mxu0 0
        %1508 = vmatpush1.bf16.msra.mxu0 0
        %1509 = vmatprep.subr.bf16.mxu0 0
        %1510 = vmatpush1.bf16.msra.mxu0 0
        %1511 = vmatprep.subr.bf16.mxu0 0
        %1512 = vmatpush1.bf16.msra.mxu0 0
        %1513 = vmatprep.subr.bf16.mxu0 0
        %1514 = vmatpush1.bf16.msra.mxu0 0
        %1515 = vmatprep.subr.bf16.mxu0 0
        %1516 = vmatpush1.bf16.msra.mxu0 0
        %1517 = vmatprep.subr.bf16.mxu0 0
        %1518 = vmatpush1.bf16.msra.mxu0 0
        %1519 = vmatprep.subr.bf16.mxu0 0
        %1520 = vmatpush1.bf16.msra.mxu0 0
        %1521 = vmatprep.subr.bf16.mxu0 0
        %1522 = vmatpush1.bf16.msra.mxu0 0
        %1523 = vmatprep.mubr.bf16.mxu0 0
        %1524 = vmatmul.mubr.bf16.gmra.mrb[0].mxu0 %v1486
        %v1525 = vpop.f32.mrb[0].mxu0
        %v1526 = vadd.f32 0.0, %v1525
        %v1527 = vpop.f32.mrb[0].mxu0
        %v1528 = vpop.f32.mrb[0].mxu0
        %v1529 = vpop.f32.mrb[0].mxu0
        %1530 = vdwg.mxu0
        %1532 = vrot.lane.b32.xlu0 %v1428, 8
        %v1533 = vpop.permute.xlu0 %1532
        %1536 = vrot.lane.b32.xlu0 %v1476, 16
        %v1537 = vpop.permute.xlu0 %1536
        %1540 = vrot.lane.b32.xlu0 %v1526, 24
        %v1541 = vpop.permute.xlu0 %1540
        %v1543 = vsel %vm427, %v1378, %v1533
        %v1544 = vsel %vm888, %v1543, %v1537
        %v1545 = vsel %vm890, %v1544, %v1541
        %v1546 = vpack.c.bf16 %v1545, %v1545
        %v1548 = vsel %vm330, %v1546, 0
        %1550 = vmatprep.subr.bf16.mxu0 0
        %1551 = vmatpush1.bf16.msra.mxu0 %v894
        %1552 = vmatprep.subr.bf16.mxu0 0
        %1553 = vmatpush1.bf16.msra.mxu0 %v896
        %1554 = vmatprep.subr.bf16.mxu0 0
        %1555 = vmatpush1.bf16.msra.mxu0 0
        %1556 = vmatprep.subr.bf16.mxu0 0
        %1557 = vmatpush1.bf16.msra.mxu0 0
        %1558 = vmatprep.subr.bf16.mxu0 0
        %1559 = vmatpush1.bf16.msra.mxu0 0
        %1560 = vmatprep.subr.bf16.mxu0 0
        %1561 = vmatpush1.bf16.msra.mxu0 0
        %1562 = vmatprep.subr.bf16.mxu0 0
        %1563 = vmatpush1.bf16.msra.mxu0 0
        %1564 = vmatprep.subr.bf16.mxu0 0
        %1565 = vmatpush1.bf16.msra.mxu0 0
        %1566 = vmatprep.subr.bf16.mxu0 0
        %1567 = vmatpush1.bf16.msra.mxu0 0
        %1568 = vmatprep.subr.bf16.mxu0 0
        %1569 = vmatpush1.bf16.msra.mxu0 0
        %1570 = vmatprep.subr.bf16.mxu0 0
        %1571 = vmatpush1.bf16.msra.mxu0 0
        %1572 = vmatprep.subr.bf16.mxu0 0
        %1573 = vmatpush1.bf16.msra.mxu0 0
        %1574 = vmatprep.subr.bf16.mxu0 0
        %1575 = vmatpush1.bf16.msra.mxu0 0
        %1576 = vmatprep.subr.bf16.mxu0 0
        %1577 = vmatpush1.bf16.msra.mxu0 0
        %1578 = vmatprep.subr.bf16.mxu0 0
        %1579 = vmatpush1.bf16.msra.mxu0 0
        %1580 = vmatprep.subr.bf16.mxu0 0
        %1581 = vmatpush1.bf16.msra.mxu0 0
        %1582 = vmatprep.mubr.bf16.mxu0 0
        %1583 = vmatmul.mubr.bf16.gmra.mrb[0].mxu0 %v1548
        %v1584 = vpop.f32.mrb[0].mxu0
        %v1585 = vadd.f32 %v901, %v1584
        %v1586 = vpop.f32.mrb[0].mxu0
        %v1587 = vpop.f32.mrb[0].mxu0
        %v1588 = vpop.f32.mrb[0].mxu0
        %1589 = vdwg.mxu0
        %v1590 = vadd.f32 %v946, %v1585
        %v1591 = vsel %vm330, %v1590, 0.0
        %1592 = vadd.xlane.f32.xlu0 %v1591
        %v1593 = vpop.xlane.xlu0 %1592
        %v1594 = vmul.f32 %v1593, %v334
        %v1595 = vsub.f32 %v1590, %v1594
        %v1596 = vmul.f32 %v1595, %v1595
        %v1597 = vsel %vm330, %v1596, 0.0
        %1598 = vadd.xlane.f32.xlu0 %v1597
        %v1599 = vpop.xlane.xlu0 %1598
        %v1600 = vmul.f32 %v1599, 0.032258064
        %v1601 = vrsqrt.pop %v1600
        %v1602 = vmul.f32 %v1600, %v1601
        %vm1603 = vcmp.eq.f32.partialorder %v1600, inf
        %v1604 = vsel %vm1603, %v1600, %v1602
        %vm1605 = vcmp.eq.f32.partialorder %v1600, 0.0
        %v1606 = vand.u32 %v1600, 2147483648
        %v1607 = vsel %vm1605, %v1606, %v1604
        %v1608 = vadd.f32 %v1607, 1e-06
        %v1609 = vrcp.pop %v1608
        %v1610 = vmul.f32 %v1595, %v1609
        %1612 = vrot.lane.b32.xlu0 %v1610, 64
        %v1613 = vpop.permute.xlu0 %1612
        %v1615 = vmul.f32 %v355, %v1613
        %v1616 = vadd.f32 %v1615, %v360
        %v1617 = vpack.c.bf16 %v1616, %v1616
        %v1618 = vlaneseq
        %v1619 = vshrl.u32 %v1618, 7
        %v1620 = vsub.s32 0, %v1619
        %v1621 = vrot.slane %v321, %v1620
        %1623 = vrot.lane.b32.xlu0 %v1617, 64
        %v1624 = vpop.permute.xlu0 %1623
        %v1629 = vunpack.c.l.b16 %v326
        %v1630 = vunpack.c.l.b16 %v327
        %v1631 = vunpack.c.l.b16 %v328
        %v1632 = vunpack.c.l.b16 %v329
        %v1633 = vpack.c.b16 %v1630, %v1629
        %v1634 = vpack.c.b16 %v1632, %v1631
        %v1638 = vsel %vm330, %v1624, 0
        %1640 = vmatprep.subr.bf16.mxu0 0
        %1641 = vmatpush1.bf16.msra.mxu0 %v1633
        %1642 = vmatprep.subr.bf16.mxu0 0
        %1643 = vmatpush1.bf16.msra.mxu0 %v1634
        %1644 = vmatprep.subr.bf16.mxu0 0
        %1645 = vmatpush1.bf16.msra.mxu0 0
        %1646 = vmatprep.subr.bf16.mxu0 0
        %1647 = vmatpush1.bf16.msra.mxu0 0
        %1648 = vmatprep.subr.bf16.mxu0 0
        %1649 = vmatpush1.bf16.msra.mxu0 0
        %1650 = vmatprep.subr.bf16.mxu0 0
        %1651 = vmatpush1.bf16.msra.mxu0 0
        %1652 = vmatprep.subr.bf16.mxu0 0
        %1653 = vmatpush1.bf16.msra.mxu0 0
        %1654 = vmatprep.subr.bf16.mxu0 0
        %1655 = vmatpush1.bf16.msra.mxu0 0
        %1656 = vmatprep.subr.bf16.mxu0 0
        %1657 = vmatpush1.bf16.msra.mxu0 0
        %1658 = vmatprep.subr.bf16.mxu0 0
        %1659 = vmatpush1.bf16.msra.mxu0 0
        %1660 = vmatprep.subr.bf16.mxu0 0
        %1661 = vmatpush1.bf16.msra.mxu0 0
        %1662 = vmatprep.subr.bf16.mxu0 0
        %1663 = vmatpush1.bf16.msra.mxu0 0
        %1664 = vmatprep.subr.bf16.mxu0 0
        %1665 = vmatpush1.bf16.msra.mxu0 0
        %1666 = vmatprep.subr.bf16.mxu0 0
        %1667 = vmatpush1.bf16.msra.mxu0 0
        %1668 = vmatprep.subr.bf16.mxu0 0
        %1669 = vmatpush1.bf16.msra.mxu0 0
        %1670 = vmatprep.subr.bf16.mxu0 0
        %1671 = vmatpush1.bf16.msra.mxu0 0
        %1672 = vmatprep.mubr.bf16.mxu0 0
        %1673 = vmatmul.mubr.bf16.gmra.mrb[0].mxu0 %v1638
        %v1674 = vpop.f32.mrb[0].mxu0
        %v1675 = vadd.f32 %v1621, %v1674
        %v1676 = vpop.f32.mrb[0].mxu0
        %v1677 = vpop.f32.mrb[0].mxu0
        %v1678 = vpop.f32.mrb[0].mxu0
        %1679 = vdwg.mxu0
        %v1680 = vmax.f32 %v1675, 0.0
        %v1681 = vpack.c.bf16 %v1680, %v1680
        %1682 = vrot.lane.b32.xlu0 %v1633, 64
        %v1683 = vpop.permute.xlu0 %1682
        %1684 = vrot.lane.b32.xlu0 %v1634, 64
        %v1685 = vpop.permute.xlu0 %1684
        %1687 = vrot.lane.b32.xlu0 %v360, 32
        %v1688 = vpop.permute.xlu0 %1687
        %vm1690 = vcmask 523264
        %v1692 = vsel %vm1690, %v1681, 0
        %v1695 = vsel %vm1690, %v1683, 0
        %v1698 = vsel %vm1690, %v1685, 0
        %1700 = vmatprep.subr.bf16.mxu0 0
        %1701 = vmatpush1.bf16.xpose.msra.mxu0 %v1695
        %1702 = vmatprep.subr.bf16.mxu0 0
        %1703 = vmatpush1.bf16.xpose.msra.mxu0 %v1698
        %1704 = vmatprep.subr.bf16.mxu0 0
        %1705 = vmatpush1.bf16.xpose.msra.mxu0 0
        %1706 = vmatprep.subr.bf16.mxu0 0
        %1707 = vmatpush1.bf16.xpose.msra.mxu0 0
        %1708 = vmatprep.subr.bf16.mxu0 0
        %1709 = vmatpush1.bf16.xpose.msra.mxu0 0
        %1710 = vmatprep.subr.bf16.mxu0 0
        %1711 = vmatpush1.bf16.xpose.msra.mxu0 0
        %1712 = vmatprep.subr.bf16.mxu0 0
        %1713 = vmatpush1.bf16.xpose.msra.mxu0 0
        %1714 = vmatprep.subr.bf16.mxu0 0
        %1715 = vmatpush1.bf16.xpose.msra.mxu0 0
        %1716 = vmatprep.subr.bf16.mxu0 0
        %1717 = vmatpush1.bf16.xpose.msra.mxu0 0
        %1718 = vmatprep.subr.bf16.mxu0 0
        %1719 = vmatpush1.bf16.xpose.msra.mxu0 0
        %1720 = vmatprep.subr.bf16.mxu0 0
        %1721 = vmatpush1.bf16.xpose.msra.mxu0 0
        %1722 = vmatprep.subr.bf16.mxu0 0
        %1723 = vmatpush1.bf16.xpose.msra.mxu0 0
        %1724 = vmatprep.subr.bf16.mxu0 0
        %1725 = vmatpush1.bf16.xpose.msra.mxu0 0
        %1726 = vmatprep.subr.bf16.mxu0 0
        %1727 = vmatpush1.bf16.xpose.msra.mxu0 0
        %1728 = vmatprep.subr.bf16.mxu0 0
        %1729 = vmatpush1.bf16.xpose.msra.mxu0 0
        %1730 = vmatprep.subr.bf16.mxu0 0
        %1731 = vmatpush1.bf16.xpose.msra.mxu0 0
        %1732 = vmatprep.mubr.bf16.mxu0 0
        %1733 = vmatmul.mubr.bf16.gmra.mrb[0].mxu0 %v1692
        %v1734 = vpop.f32.mrb[0].mxu0
        %v1735 = vadd.f32 %v1688, %v1734
        %v1736 = vpop.f32.mrb[0].mxu0
        %v1737 = vpop.f32.mrb[0].mxu0
        %v1738 = vpop.f32.mrb[0].mxu0
        %1739 = vdwg.mxu0
        %v1740 = vadd.f32 %v1590, %v1735
        %1741 = vst.msk [vmem:[%s303] sm:$0xff] %vm330, %v1740
        %s1742 = sand.u32 %s177, 1
        %s1743 = scalar_lea.sflag [#allocation4], %s1742
        %s1744 = sand.u32 %s177, 1
        %s1745 = smul.addr %s1744, 8
        %s1746 = scalar_lea.vmem [#allocation5], %s1745
        // Predicated region
        $region49: #{decoder_layer.1} parent=43 // pred_check
          %p1747 = pneg %p187
        $region50: #{decoder_layer.1} parent=43 // pred_check_branch
          %1749 = sbr.rel (%p1747) target = $region52
        $region51: #{decoder_layer.1} parent=43 // pred_region
          %s1751 = ssub.s32 128, 128
          %1752 = vsyncadd %s1743, %s1751
          %s1753 = smul.addr %s23, 128
          %s1754 = scalar_lea.hbm %s6, %s1753
          %s1756 = sshll.u32 %s1746, 4
          %s1757 = int_to_ptr.vmem [resolvable:$true] %s1756
          %1759 = dma.vmem_to_hbm [thread:$0]  %s1757, 128, %s1754, %s1743
        $region52: #{decoder_layer.1} parent=43 // pred_fallthru
          _
      $region44: #{decoder_layer.1} parent=5 // pred_fallthru
        _
      %p1760 = scmp.le.s32.totalorder 2, %s18
      // Predicated region
      $region53: #{decoder_layer.1} parent=5 // pred_check
        %p1761 = pneg %p1760
      $region54: #{decoder_layer.1} parent=5 // pred_check_branch
        %1763 = sbr.rel (%p1761) target = $region56
      $region55: #{decoder_layer.1} parent=5 // pred_region
        %s1764 = ssub.s32 %s18, 2
        // Predicated region
        $region57: #{decoder_layer.1} parent=55 // pred_check
          %p1765 = pneg %p193
        $region58: #{decoder_layer.1} parent=55 // pred_check_branch
          %1767 = sbr.rel (%p1765) target = $region60
        $region59: #{decoder_layer.1} parent=55 // pred_region
          %s1768 = sand.u32 %s178, 1
          %s1769 = scalar_lea.sflag [#allocation4], %s1768
          %s1770 = sand.u32 %s178, 1
          %s1771 = smul.addr %s1770, 8
          %s1772 = scalar_lea.vmem [#allocation5], %s1771
          %1773 = dma.done %s1769, 128
        $region60: #{decoder_layer.1} parent=55 // pred_fallthru
          _
      $region56: #{decoder_layer.1} parent=5 // pred_fallthru
        _
    $region6: #{decoder_layer.1} parent=1 // loop_footer
      %s22 = sadd.s32 1, %s18
    $region7: #{decoder_layer.1} parent=1 // loop_footer_branch
      %17 = sbr.rel target = $region3
    $region8: #{decoder_layer.1} parent=1 // loop_exit
      _
    %1774 = vsyncpa [#allocation3], 1
    %s1775 = scalar_lea.sflag [#allocation3], 1
    %1776 = vsyncpa %s1775, 1
    %1777 = vsyncpa [#allocation4], 1
    %s1778 = scalar_lea.sflag [#allocation4], 1
    %1779 = vsyncpa %s1778, 1

</llo_original>
